<compile_context>
chip_gen: v5e
topology: v5e:2x2
jax: 0.10.0
libtpu: 0.0.40
codegen_flags: <defaults>
</compile_context>

<pallas_src>
import functools

import jax
import jax.numpy as jnp
from jax.experimental import pallas as pl
from jax.experimental.pallas import tpu as pltpu


D_IN, D1, D2, D3, D_OUT = 784, 512, 256, 128, 10
D_OUT_PAD = 128     # lane-dense output (avoid masked vst on a 10-wide tile)


def _round_up(x, m):
    return ((x + m - 1) // m) * m


def _cdiv(a, b):
    return (a + b - 1) // b


def _tpu_generation():
    """Best-effort TPU generation (e.g. 5, 6, 7); 0 if unknown."""
    try:
        kind = jax.devices()[0].device_kind.lower()
    except Exception:
        return 0
    for g in (7, 6, 5, 4, 3, 2):
        if f"v{g}" in kind:
            return g
    return 0


def fc_mnist_kernel(x_ref, w1_ref, b1_ref, w2_ref, b2_ref,
                    w3_ref, b3_ref, w4_ref, b4_ref, o_ref, *, act_dtype):
    """x_ref: (TB, 784) fp32 batch tile; weights bf16 (in, out); biases fp32 (1, out).

    act_dtype = bf16 on v6e/v7x (bf16 bias/ReLU epilogue, no inter-layer packs),
    fp32 on v5e/older (VPU has no bf16)."""
    # fc1: cast the input tile to bf16 right before the dot (no wrapper HBM pass).
    x = x_ref[...].astype(jnp.bfloat16)
    h = jnp.dot(x, w1_ref[...], preferred_element_type=act_dtype)
    h = jnp.maximum(h + b1_ref[...].astype(act_dtype), 0.0)          # fc1 + ReLU
    # dropout(p=0.5) -> identity at inference
    h = jnp.dot(h.astype(jnp.bfloat16), w2_ref[...], preferred_element_type=act_dtype)
    h = jnp.maximum(h + b2_ref[...].astype(act_dtype), 0.0)          # fc2 + ReLU
    h = jnp.dot(h.astype(jnp.bfloat16), w3_ref[...], preferred_element_type=act_dtype)
    h = jnp.maximum(h + b3_ref[...].astype(act_dtype), 0.0)          # fc3 + ReLU
    o = jnp.dot(h.astype(jnp.bfloat16), w4_ref[...], preferred_element_type=jnp.float32)
    o_ref[...] = (o + b4_ref[...]).astype(o_ref.dtype)               # fc4 logits (128 lanes)


def prepare_params(params):
    """One-time (model-load) weight prep: pad fc4 to 128 output lanes, cast weights
    to bf16. Biases stay fp32 (cast in-kernel when the bf16 epilogue is active)."""
    (w1, b1), (w2, b2), (w3, b3), (w4, b4) = params
    w4p = jnp.pad(w4, ((0, 0), (0, D_OUT_PAD - D_OUT)))
    b4p = jnp.pad(b4, ((0, 0), (0, D_OUT_PAD - D_OUT)))
    return (
        (w1.astype(jnp.bfloat16), b1.astype(jnp.float32)),
        (w2.astype(jnp.bfloat16), b2.astype(jnp.float32)),
        (w3.astype(jnp.bfloat16), b3.astype(jnp.float32)),
        (w4p.astype(jnp.bfloat16), b4p.astype(jnp.float32)),
    )


@functools.partial(jax.jit, static_argnames=("tb", "act_dtype", "num_cores"))
def fc_mnist_forward(x, prepared_params, *, tb=1024, act_dtype=jnp.float32, num_cores=1):
    """x: (B, 1, 28, 28) float32 -> logits (B, 10) float32."""
    B = x.shape[0]
    x2d = x.reshape(B, -1).astype(jnp.float32)                       # (B, 784) fp32
    (w1, b1), (w2, b2), (w3, b3), (w4, b4) = prepared_params

    # Balanced batch tiling:
    #   * enough tiles to cover B with <= tb rows each,
    #   * at least num_cores tiles when the batch is big enough (v7x: 2 TCs),
    #   * each tile a multiple of 8 sublanes, so dead padding < 8 rows per tile.
    split = num_cores if B >= 64 * num_cores else 1
    n_tiles = max(_cdiv(B, tb), split)
    tb_eff = _round_up(_cdiv(B, n_tiles), 8)
    pad_B = n_tiles * tb_eff
    if pad_B != B:
        x2d = jnp.pad(x2d, ((0, pad_B - B), (0, 0)))

    grid = (n_tiles,)
    full = lambda i: (0, 0)                                          # weights/biases resident
    batch_tile = lambda i: (i, 0)

    flops = 2 * pad_B * (D_IN * D1 + D1 * D2 + D2 * D3 + D3 * D_OUT_PAD)
    bytes_accessed = (
        pad_B * D_IN * 4                                             # x (fp32)
        + (D_IN * D1 + D1 * D2 + D2 * D3 + D3 * D_OUT_PAD) * 2       # weights (bf16)
        + (D1 + D2 + D3 + D_OUT_PAD) * 4                             # biases (fp32)
        + pad_B * D_OUT_PAD * 4                                      # output (fp32)
    )

    out = pl.pallas_call(
        functools.partial(fc_mnist_kernel, act_dtype=act_dtype),
        out_shape=jax.ShapeDtypeStruct((pad_B, D_OUT_PAD), jnp.float32),
        grid_spec=pltpu.PrefetchScalarGridSpec(
            num_scalar_prefetch=0,
            grid=grid,
            in_specs=[
                pl.BlockSpec((tb_eff, D_IN), batch_tile),            # x tile fp32 (tb, 784)
                pl.BlockSpec((D_IN, D1), full),                      # w1 (784, 512) bf16
                pl.BlockSpec((1, D1), full),                         # b1 fp32
                pl.BlockSpec((D1, D2), full),                        # w2 (512, 256) bf16
                pl.BlockSpec((1, D2), full),                         # b2 fp32
                pl.BlockSpec((D2, D3), full),                        # w3 (256, 128) bf16
                pl.BlockSpec((1, D3), full),                         # b3 fp32
                pl.BlockSpec((D3, D_OUT_PAD), full),                 # w4 (128, 128) bf16
                pl.BlockSpec((1, D_OUT_PAD), full),                  # b4 fp32
            ],
            out_specs=pl.BlockSpec((tb_eff, D_OUT_PAD), batch_tile),
        ),
        compiler_params=pltpu.CompilerParams(
            dimension_semantics=("parallel",),
            vmem_limit_bytes=48 << 20,
        ),
        cost_estimate=pl.CostEstimate(
            flops=flops, transcendentals=0, bytes_accessed=bytes_accessed),
    )(x2d, w1, b1, w2, b2, w3, b3, w4, b4)

    return out[:B, :D_OUT]


def init_params(key):
    """Deterministic init matching PyTorch nn.Linear default (U[-1/sqrt(fan_in), +1/sqrt(fan_in)]).
    Weights stored transposed as (in, out); biases as (1, out)."""
    dims = [(D_IN, D1), (D1, D2), (D2, D3), (D3, D_OUT)]
    params = []
    for (fan_in, fan_out) in dims:
        key, kw, kb = jax.random.split(key, 3)
        bound = 1.0 / jnp.sqrt(float(fan_in))
        w = jax.random.uniform(kw, (fan_in, fan_out), jnp.float32, -bound, bound)
        b = jax.random.uniform(kb, (1, fan_out), jnp.float32, -bound, bound)
        params.append((w, b))
    return params


def reference_forward(x, params, act_dtype):
    """Pure-JAX reference with the same bf16-operand / act_dtype-epilogue numerics."""
    h = x.reshape(x.shape[0], -1)
    (w1, b1), (w2, b2), (w3, b3), (w4, b4) = params

    def mm(a, w, out_dtype):
        return jnp.dot(a.astype(jnp.bfloat16), w.astype(jnp.bfloat16),
                       preferred_element_type=out_dtype)

    h = jnp.maximum(mm(h, w1, act_dtype) + b1.astype(act_dtype), 0.0)
    h = jnp.maximum(mm(h, w2, act_dtype) + b2.astype(act_dtype), 0.0)
    h = jnp.maximum(mm(h, w3, act_dtype) + b3.astype(act_dtype), 0.0)
    return (mm(h, w4, jnp.float32) + b4).astype(jnp.float32)


if __name__ == "__main__":
    key = jax.random.PRNGKey(0)
    k_x, k_p = jax.random.split(key)

    B = 8
    x = jax.random.normal(k_x, (B, 1, 28, 28), jnp.float32)          # MNIST-shaped NCHW input
    params = init_params(k_p)
    prepared = prepare_params(params)                                # one-time weight prep

    gen = _tpu_generation()
    act_dtype = jnp.bfloat16 if gen >= 6 else jnp.float32            # bf16 epilogue on v6e/v7x
    num_cores = 2 if gen >= 7 else 1                                 # v7x: 2 TensorCores/chip

    out = fc_mnist_forward(x, prepared, act_dtype=act_dtype, num_cores=num_cores)
    out = jax.block_until_ready(out)

    ref = reference_forward(x, params, act_dtype)
    assert out.shape == (B, 10), out.shape
    assert jnp.allclose(out, ref, atol=2e-2, rtol=2e-2), "mismatch vs reference"

    print("KERNEL_OK")
</pallas_src>

<mosaic_0001>
module attributes {stable_mosaic.version = 11 : i64} {
  func.func @fc_mnist_kernel(%arg0: i32, %arg1: memref<8x784xf32, #tpu.memory_space<vmem>>, %arg2: memref<784x512xbf16, #tpu.memory_space<vmem>>, %arg3: memref<1x512xf32, #tpu.memory_space<vmem>>, %arg4: memref<512x256xbf16, #tpu.memory_space<vmem>>, %arg5: memref<1x256xf32, #tpu.memory_space<vmem>>, %arg6: memref<256x128xbf16, #tpu.memory_space<vmem>>, %arg7: memref<1x128xf32, #tpu.memory_space<vmem>>, %arg8: memref<128x128xbf16, #tpu.memory_space<vmem>>, %arg9: memref<1x128xf32, #tpu.memory_space<vmem>>, %arg10: memref<8x128xf32, #tpu.memory_space<vmem>>) attributes {dimension_semantics = [#tpu.dimension_semantics<parallel>], iteration_bounds = array<i64: 1>, scalar_prefetch = 0 : i64, scratch_operands = 0 : i64, tpu.core_type = #tpu.core_type<tc>, window_params = [{transform_indices = @transform_0, window_bounds = array<i64: 8, 784>}, {pipeline_mode = #tpu.pipeline_mode<synchronous>, transform_indices = @transform_1, window_bounds = array<i64: 784, 512>}, {pipeline_mode = #tpu.pipeline_mode<synchronous>, transform_indices = @transform_2, window_bounds = array<i64: 1, 512>}, {pipeline_mode = #tpu.pipeline_mode<synchronous>, transform_indices = @transform_3, window_bounds = array<i64: 512, 256>}, {pipeline_mode = #tpu.pipeline_mode<synchronous>, transform_indices = @transform_4, window_bounds = array<i64: 1, 256>}, {pipeline_mode = #tpu.pipeline_mode<synchronous>, transform_indices = @transform_5, window_bounds = array<i64: 256, 128>}, {pipeline_mode = #tpu.pipeline_mode<synchronous>, transform_indices = @transform_6, window_bounds = array<i64: 1, 128>}, {pipeline_mode = #tpu.pipeline_mode<synchronous>, transform_indices = @transform_7, window_bounds = array<i64: 128, 128>}, {pipeline_mode = #tpu.pipeline_mode<synchronous>, transform_indices = @transform_8, window_bounds = array<i64: 1, 128>}, {transform_indices = @transform_9, window_bounds = array<i64: 8, 128>}]} {
    %c0 = arith.constant 0 : index
    %c0_0 = arith.constant 0 : index
    %0 = vector.load %arg1[%c0, %c0_0] : memref<8x784xf32, #tpu.memory_space<vmem>>, vector<8x784xf32>
    %1 = arith.truncf %0 : vector<8x784xf32> to vector<8x784xbf16>
    %c0_1 = arith.constant 0 : index
    %c0_2 = arith.constant 0 : index
    %2 = vector.load %arg2[%c0_1, %c0_2] : memref<784x512xbf16, #tpu.memory_space<vmem>>, vector<784x512xbf16>
    %cst = arith.constant dense<0.000000e+00> : vector<8x512xf32>
    %3 = tpu.matmul %1, %2, %cst {dimension_numbers = #tpu.dot_dimension_numbers<[1], [0], [0], [1], [0, 0, 1, 1], [], []>} : vector<8x784xbf16>, vector<784x512xbf16>, vector<8x512xf32> -> vector<8x512xf32>
    %c0_3 = arith.constant 0 : index
    %c0_4 = arith.constant 0 : index
    %4 = vector.load %arg3[%c0_3, %c0_4] : memref<1x512xf32, #tpu.memory_space<vmem>>, vector<1x512xf32>
    %5 = vector.broadcast %4 : vector<1x512xf32> to vector<8x512xf32>
    %6 = arith.addf %3, %5 : vector<8x512xf32>
    %cst_5 = arith.constant 0.000000e+00 : f32
    %7 = vector.broadcast %cst_5 : f32 to vector<8x512xf32>
    %8 = arith.maximumf %6, %7 : vector<8x512xf32>
    %9 = arith.truncf %8 : vector<8x512xf32> to vector<8x512xbf16>
    %c0_6 = arith.constant 0 : index
    %c0_7 = arith.constant 0 : index
    %10 = vector.load %arg4[%c0_6, %c0_7] : memref<512x256xbf16, #tpu.memory_space<vmem>>, vector<512x256xbf16>
    %cst_8 = arith.constant dense<0.000000e+00> : vector<8x256xf32>
    %11 = tpu.matmul %9, %10, %cst_8 {dimension_numbers = #tpu.dot_dimension_numbers<[1], [0], [0], [1], [0, 0, 1, 1], [], []>} : vector<8x512xbf16>, vector<512x256xbf16>, vector<8x256xf32> -> vector<8x256xf32>
    %c0_9 = arith.constant 0 : index
    %c0_10 = arith.constant 0 : index
    %12 = vector.load %arg5[%c0_9, %c0_10] : memref<1x256xf32, #tpu.memory_space<vmem>>, vector<1x256xf32>
    %13 = vector.broadcast %12 : vector<1x256xf32> to vector<8x256xf32>
    %14 = arith.addf %11, %13 : vector<8x256xf32>
    %cst_11 = arith.constant 0.000000e+00 : f32
    %15 = vector.broadcast %cst_11 : f32 to vector<8x256xf32>
    %16 = arith.maximumf %14, %15 : vector<8x256xf32>
    %17 = arith.truncf %16 : vector<8x256xf32> to vector<8x256xbf16>
    %c0_12 = arith.constant 0 : index
    %c0_13 = arith.constant 0 : index
    %18 = vector.load %arg6[%c0_12, %c0_13] : memref<256x128xbf16, #tpu.memory_space<vmem>>, vector<256x128xbf16>
    %cst_14 = arith.constant dense<0.000000e+00> : vector<8x128xf32>
    %19 = tpu.matmul %17, %18, %cst_14 {dimension_numbers = #tpu.dot_dimension_numbers<[1], [0], [0], [1], [0, 0, 1, 1], [], []>} : vector<8x256xbf16>, vector<256x128xbf16>, vector<8x128xf32> -> vector<8x128xf32>
    %c0_15 = arith.constant 0 : index
    %c0_16 = arith.constant 0 : index
    %20 = vector.load %arg7[%c0_15, %c0_16] : memref<1x128xf32, #tpu.memory_space<vmem>>, vector<1x128xf32>
    %21 = vector.broadcast %20 : vector<1x128xf32> to vector<8x128xf32>
    %22 = arith.addf %19, %21 : vector<8x128xf32>
    %cst_17 = arith.constant 0.000000e+00 : f32
    %23 = vector.broadcast %cst_17 : f32 to vector<8x128xf32>
    %24 = arith.maximumf %22, %23 : vector<8x128xf32>
    %25 = arith.truncf %24 : vector<8x128xf32> to vector<8x128xbf16>
    %c0_18 = arith.constant 0 : index
    %c0_19 = arith.constant 0 : index
    %26 = vector.load %arg8[%c0_18, %c0_19] : memref<128x128xbf16, #tpu.memory_space<vmem>>, vector<128x128xbf16>
    %cst_20 = arith.constant dense<0.000000e+00> : vector<8x128xf32>
    %27 = tpu.matmul %25, %26, %cst_20 {dimension_numbers = #tpu.dot_dimension_numbers<[1], [0], [0], [1], [0, 0, 1, 1], [], []>} : vector<8x128xbf16>, vector<128x128xbf16>, vector<8x128xf32> -> vector<8x128xf32>
    %c0_21 = arith.constant 0 : index
    %c0_22 = arith.constant 0 : index
    %28 = vector.load %arg9[%c0_21, %c0_22] : memref<1x128xf32, #tpu.memory_space<vmem>>, vector<1x128xf32>
    %29 = vector.broadcast %28 : vector<1x128xf32> to vector<8x128xf32>
    %30 = arith.addf %27, %29 : vector<8x128xf32>
    %c0_23 = arith.constant 0 : index
    %c0_24 = arith.constant 0 : index
    %31 = vector.load %arg10[%c0_23, %c0_24] : memref<8x128xf32, #tpu.memory_space<vmem>>, vector<8x128xf32>
    tpu.vector_store %arg10[%c0_23, %c0_24], %30 {strides = array<i32>} : memref<8x128xf32, #tpu.memory_space<vmem>>, vector<8x128xf32>,
    return
  }
  func.func @transform_0(%arg0: i32) -> (i32, i32) {
    %c0_i32 = arith.constant 0 : i32
    %c0_i32_0 = arith.constant 0 : i32
    return %arg0, %c0_i32 : i32, i32
  }
  func.func @transform_1(%arg0: i32) -> (i32, i32) {
    %c0_i32 = arith.constant 0 : i32
    %c0_i32_0 = arith.constant 0 : i32
    %c0_i32_1 = arith.constant 0 : i32
    return %c0_i32, %c0_i32_0 : i32, i32
  }
  func.func @transform_2(%arg0: i32) -> (i32, i32) {
    %c0_i32 = arith.constant 0 : i32
    %c0_i32_0 = arith.constant 0 : i32
    %c0_i32_1 = arith.constant 0 : i32
    return %c0_i32, %c0_i32_0 : i32, i32
  }
  func.func @transform_3(%arg0: i32) -> (i32, i32) {
    %c0_i32 = arith.constant 0 : i32
    %c0_i32_0 = arith.constant 0 : i32
    %c0_i32_1 = arith.constant 0 : i32
    return %c0_i32, %c0_i32_0 : i32, i32
  }
  func.func @transform_4(%arg0: i32) -> (i32, i32) {
    %c0_i32 = arith.constant 0 : i32
    %c0_i32_0 = arith.constant 0 : i32
    %c0_i32_1 = arith.constant 0 : i32
    return %c0_i32, %c0_i32_0 : i32, i32
  }
  func.func @transform_5(%arg0: i32) -> (i32, i32) {
    %c0_i32 = arith.constant 0 : i32
    %c0_i32_0 = arith.constant 0 : i32
    %c0_i32_1 = arith.constant 0 : i32
    return %c0_i32, %c0_i32_0 : i32, i32
  }
  func.func @transform_6(%arg0: i32) -> (i32, i32) {
    %c0_i32 = arith.constant 0 : i32
    %c0_i32_0 = arith.constant 0 : i32
    %c0_i32_1 = arith.constant 0 : i32
    return %c0_i32, %c0_i32_0 : i32, i32
  }
  func.func @transform_7(%arg0: i32) -> (i32, i32) {
    %c0_i32 = arith.constant 0 : i32
    %c0_i32_0 = arith.constant 0 : i32
    %c0_i32_1 = arith.constant 0 : i32
    return %c0_i32, %c0_i32_0 : i32, i32
  }
  func.func @transform_8(%arg0: i32) -> (i32, i32) {
    %c0_i32 = arith.constant 0 : i32
    %c0_i32_0 = arith.constant 0 : i32
    %c0_i32_1 = arith.constant 0 : i32
    return %c0_i32, %c0_i32_0 : i32, i32
  }
  func.func @transform_9(%arg0: i32) -> (i32, i32) {
    %c0_i32 = arith.constant 0 : i32
    %c0_i32_0 = arith.constant 0 : i32
    return %arg0, %c0_i32 : i32, i32
  }
}

</mosaic_0001>

<llo_original>
// kernel: fc_mnist_forward.1
$region0: #{fc_mnist_forward.1}
  #allocation0 [shape = 'u32[]', space=smem, size = 0x4, offset = 0x4, fixed_abs, tag = 'smem constant byte address 0x4 - core index']
  #allocation1 [shape = 'u32[72,128]{1,0:T(1,128)}', space=vmem, size = 0x9000, scoped, tag = 'internal scratch']
  %s0 = inlined_call_operand.vmem [shape: f32[8,784], index: 0, kind: input, shape index: {}]
  %s1 = inlined_call_operand.hbm [shape: bf16[784,512], index: 1, kind: input, shape index: {}]
  %s2 = inlined_call_operand.vmem [shape: f32[1,512], index: 2, kind: input, shape index: {}]
  %s3 = inlined_call_operand.vmem [shape: bf16[512,256], index: 3, kind: input, shape index: {}]
  %s4 = inlined_call_operand.vmem [shape: f32[1,256], index: 4, kind: input, shape index: {}]
  %s5 = inlined_call_operand.vmem [shape: bf16[256,128], index: 5, kind: input, shape index: {}]
  %s6 = inlined_call_operand.vmem [shape: f32[1,128], index: 6, kind: input, shape index: {}]
  %s7 = inlined_call_operand.vmem [shape: bf16[128,128], index: 7, kind: input, shape index: {}]
  %s8 = inlined_call_operand.vmem [shape: f32[1,128], index: 8, kind: input, shape index: {}]
  %s9 = inlined_call_operand.hbm [shape: f32[8,128], index: 9, kind: output, shape index: {}]
  %s10 = sld [smem:[#allocation0]]
  $region50: #{fc_mnist_forward.1} parent=0
    _
  %s12 = ssub.s32 1, %s10
  %s13 = scalar_select 0, %s12, %s10
  $region1: #{fc_mnist_forward.1} parent=0
    #allocation2 [shape = 'u8[802816]{0}', space=vmem, size = 0xc4000, scoped, tag = 'input window, operand 1, single buffered']
    #allocation3 [shape = 's32[1]{0}', space=sflag, size = 0x4, scoped, tag = 'scoped memory for fc_mnist_forward.1']
    #allocation4 [shape = 's32[1]{0}', space=sflag, size = 0x4, scoped, tag = 'scoped memory for fc_mnist_forward.1']
    #allocation5 [shape = 'u8[4096]{0}', space=vmem, size = 0x1000, scoped, tag = 'output window, operand 0, single buffered']
    %14 = vsyncpa [#allocation3], 0
    %15 = vsyncpa [#allocation4], 0
    // Predicated region
    $region2: #{fc_mnist_forward.1} parent=1 // pred_check
      _
    $region3: #{fc_mnist_forward.1} parent=1 // pred_check_branch
      %17 = sbr.rel (0) target = $region5
    $region4: #{fc_mnist_forward.1} parent=1 // pred_region
      _
    $region5: #{fc_mnist_forward.1} parent=1 // pred_fallthru
      _
    // Predicated region
    $region6: #{fc_mnist_forward.1} parent=1 // pred_check
      _
    $region7: #{fc_mnist_forward.1} parent=1 // pred_check_branch
      %19 = sbr.rel (0) target = $region9
    $region8: #{fc_mnist_forward.1} parent=1 // pred_region
      %21 = vsyncadd [#allocation3], 0
      %s22 = sshll.u32 %s1, 4
      %s23 = int_to_ptr.hbm [resolvable:$true] %s22
      %s24 = sshll.u32 [#allocation2], 4
      %s25 = int_to_ptr.vmem [resolvable:$true] %s24
      %30 = dma.hbm_to_vmem [thread:$0]  %s23, 25088, %s25, [#allocation3], 256, 256, 16
    $region9: #{fc_mnist_forward.1} parent=1 // pred_fallthru
      _
    // Predicated region
    $region10: #{fc_mnist_forward.1} parent=1 // pred_check
      _
    $region11: #{fc_mnist_forward.1} parent=1 // pred_check_branch
      %32 = sbr.rel (0) target = $region13
    $region12: #{fc_mnist_forward.1} parent=1 // pred_region
      _
    $region13: #{fc_mnist_forward.1} parent=1 // pred_fallthru
      _
    // Predicated region
    $region14: #{fc_mnist_forward.1} parent=1 // pred_check
      _
    $region15: #{fc_mnist_forward.1} parent=1 // pred_check_branch
      %34 = sbr.rel (0) target = $region17
    $region16: #{fc_mnist_forward.1} parent=1 // pred_region
      _
    $region17: #{fc_mnist_forward.1} parent=1 // pred_fallthru
      _
    // Predicated region
    $region18: #{fc_mnist_forward.1} parent=1 // pred_check
      _
    $region19: #{fc_mnist_forward.1} parent=1 // pred_check_branch
      %36 = sbr.rel (0) target = $region21
    $region20: #{fc_mnist_forward.1} parent=1 // pred_region
      _
    $region21: #{fc_mnist_forward.1} parent=1 // pred_fallthru
      _
    // Predicated region
    $region22: #{fc_mnist_forward.1} parent=1 // pred_check
      _
    $region23: #{fc_mnist_forward.1} parent=1 // pred_check_branch
      %38 = sbr.rel (0) target = $region25
    $region24: #{fc_mnist_forward.1} parent=1 // pred_region
      _
    $region25: #{fc_mnist_forward.1} parent=1 // pred_fallthru
      _
    // Predicated region
    $region26: #{fc_mnist_forward.1} parent=1 // pred_check
      _
    $region27: #{fc_mnist_forward.1} parent=1 // pred_check_branch
      %40 = sbr.rel (0) target = $region29
    $region28: #{fc_mnist_forward.1} parent=1 // pred_region
      _
    $region29: #{fc_mnist_forward.1} parent=1 // pred_fallthru
      _
    // Predicated region
    $region30: #{fc_mnist_forward.1} parent=1 // pred_check
      _
    $region31: #{fc_mnist_forward.1} parent=1 // pred_check_branch
      %42 = sbr.rel (0) target = $region33
    $region32: #{fc_mnist_forward.1} parent=1 // pred_region
      _
    $region33: #{fc_mnist_forward.1} parent=1 // pred_fallthru
      _
    // Predicated region
    $region34: #{fc_mnist_forward.1} parent=1 // pred_check
      _
    $region35: #{fc_mnist_forward.1} parent=1 // pred_check_branch
      %44 = sbr.rel (0) target = $region37
    $region36: #{fc_mnist_forward.1} parent=1 // pred_region
      _
    $region37: #{fc_mnist_forward.1} parent=1 // pred_fallthru
      _
    // Predicated region
    $region38: #{fc_mnist_forward.1} parent=1 // pred_check
      _
    $region39: #{fc_mnist_forward.1} parent=1 // pred_check_branch
      %46 = sbr.rel (0) target = $region41
    $region40: #{fc_mnist_forward.1} parent=1 // pred_region
      %48 = dma.done [#allocation3], 25088
    $region41: #{fc_mnist_forward.1} parent=1 // pred_fallthru
      _
    %v50 = vld [vmem:[%s0] sm:$0xff]
    %v51 = vld [vmem:[%s0 + $0x8] sm:$0xff]
    %v52 = vld [vmem:[%s0 + $0x10] sm:$0xff]
    %v53 = vld [vmem:[%s0 + $0x18] sm:$0xff]
    %v54 = vld [vmem:[%s0 + $0x20] sm:$0xff]
    %v55 = vld [vmem:[%s0 + $0x28] sm:$0xff]
    %v56 = vld [vmem:[%s0 + $0x30] sm:$0xff]
    %v57 = vpack.c.bf16 %v50, %v50
    %v58 = vpack.c.bf16 %v51, %v51
    %v59 = vpack.c.bf16 %v52, %v52
    %v60 = vpack.c.bf16 %v53, %v53
    %v61 = vpack.c.bf16 %v54, %v54
    %v62 = vpack.c.bf16 %v55, %v55
    %v63 = vpack.c.bf16 %v56, %v56
    %v64 = vld [vmem:[#allocation2] sm:$0xff]
    %v65 = vld [vmem:[#allocation2 + $0x8] sm:$0xff]
    %v66 = vld [vmem:[#allocation2 + $0x10] sm:$0xff]
    %v67 = vld [vmem:[#allocation2 + $0x18] sm:$0xff]
    %v68 = vld [vmem:[#allocation2 + $0x20] sm:$0xff]
    %v69 = vld [vmem:[#allocation2 + $0x28] sm:$0xff]
    %v70 = vld [vmem:[#allocation2 + $0x30] sm:$0xff]
    %v71 = vld [vmem:[#allocation2 + $0x38] sm:$0xff]
    %v72 = vld [vmem:[#allocation2 + $0x40] sm:$0xff]
    %v73 = vld [vmem:[#allocation2 + $0x48] sm:$0xff]
    %v74 = vld [vmem:[#allocation2 + $0x50] sm:$0xff]
    %v75 = vld [vmem:[#allocation2 + $0x58] sm:$0xff]
    %v76 = vld [vmem:[#allocation2 + $0x60] sm:$0xff]
    %v77 = vld [vmem:[#allocation2 + $0x68] sm:$0xff]
    %v78 = vld [vmem:[#allocation2 + $0x70] sm:$0xff]
    %v79 = vld [vmem:[#allocation2 + $0x78] sm:$0xff]
    %v80 = vld [vmem:[#allocation2 + $0x80] sm:$0xff]
    %v81 = vld [vmem:[#allocation2 + $0x88] sm:$0xff]
    %v82 = vld [vmem:[#allocation2 + $0x90] sm:$0xff]
    %v83 = vld [vmem:[#allocation2 + $0x98] sm:$0xff]
    %v84 = vld [vmem:[#allocation2 + $0xa0] sm:$0xff]
    %v85 = vld [vmem:[#allocation2 + $0xa8] sm:$0xff]
    %v86 = vld [vmem:[#allocation2 + $0xb0] sm:$0xff]
    %v87 = vld [vmem:[#allocation2 + $0xb8] sm:$0xff]
    %v88 = vld [vmem:[#allocation2 + $0xc0] sm:$0xff]
    %v89 = vld [vmem:[#allocation2 + $0xc8] sm:$0xff]
    %v90 = vld [vmem:[#allocation2 + $0xd0] sm:$0xff]
    %v91 = vld [vmem:[#allocation2 + $0xd8] sm:$0xff]
    %v92 = vld [vmem:[#allocation2 + $0xe0] sm:$0xff]
    %v93 = vld [vmem:[#allocation2 + $0xe8] sm:$0xff]
    %v94 = vld [vmem:[#allocation2 + $0xf0] sm:$0xff]
    %v95 = vld [vmem:[#allocation2 + $0xf8] sm:$0xff]
    %v96 = vld [vmem:[#allocation2 + $0x100] sm:$0xff]
    %v97 = vld [vmem:[#allocation2 + $0x108] sm:$0xff]
    %v98 = vld [vmem:[#allocation2 + $0x110] sm:$0xff]
    %v99 = vld [vmem:[#allocation2 + $0x118] sm:$0xff]
    %v100 = vld [vmem:[#allocation2 + $0x120] sm:$0xff]
    %v101 = vld [vmem:[#allocation2 + $0x128] sm:$0xff]
    %v102 = vld [vmem:[#allocation2 + $0x130] sm:$0xff]
    %v103 = vld [vmem:[#allocation2 + $0x138] sm:$0xff]
    %v104 = vld [vmem:[#allocation2 + $0x140] sm:$0xff]
    %v105 = vld [vmem:[#allocation2 + $0x148] sm:$0xff]
    %v106 = vld [vmem:[#allocation2 + $0x150] sm:$0xff]
    %v107 = vld [vmem:[#allocation2 + $0x158] sm:$0xff]
    %v108 = vld [vmem:[#allocation2 + $0x160] sm:$0xff]
    %v109 = vld [vmem:[#allocation2 + $0x168] sm:$0xff]
    %v110 = vld [vmem:[#allocation2 + $0x170] sm:$0xff]
    %v111 = vld [vmem:[#allocation2 + $0x178] sm:$0xff]
    %v112 = vld [vmem:[#allocation2 + $0x180] sm:$0xff]
    %v113 = vld [vmem:[#allocation2 + $0x188] sm:$0xff]
    %v114 = vld [vmem:[#allocation2 + $0x190] sm:$0xff]
    %v115 = vld [vmem:[#allocation2 + $0x198] sm:$0xff]
    %v116 = vld [vmem:[#allocation2 + $0x1a0] sm:$0xff]
    %v117 = vld [vmem:[#allocation2 + $0x1a8] sm:$0xff]
    %v118 = vld [vmem:[#allocation2 + $0x1b0] sm:$0xff]
    %v119 = vld [vmem:[#allocation2 + $0x1b8] sm:$0xff]
    %v120 = vld [vmem:[#allocation2 + $0x1c0] sm:$0xff]
    %v121 = vld [vmem:[#allocation2 + $0x1c8] sm:$0xff]
    %v122 = vld [vmem:[#allocation2 + $0x1d0] sm:$0xff]
    %v123 = vld [vmem:[#allocation2 + $0x1d8] sm:$0xff]
    %v124 = vld [vmem:[#allocation2 + $0x1e0] sm:$0xff]
    %v125 = vld [vmem:[#allocation2 + $0x1e8] sm:$0xff]
    %v126 = vld [vmem:[#allocation2 + $0x1f0] sm:$0xff]
    %v127 = vld [vmem:[#allocation2 + $0x1f8] sm:$0xff]
    %v128 = vld [vmem:[#allocation2 + $0x200] sm:$0xff]
    %v129 = vld [vmem:[#allocation2 + $0x208] sm:$0xff]
    %v130 = vld [vmem:[#allocation2 + $0x210] sm:$0xff]
    %v131 = vld [vmem:[#allocation2 + $0x218] sm:$0xff]
    %v132 = vld [vmem:[#allocation2 + $0x220] sm:$0xff]
    %v133 = vld [vmem:[#allocation2 + $0x228] sm:$0xff]
    %v134 = vld [vmem:[#allocation2 + $0x230] sm:$0xff]
    %v135 = vld [vmem:[#allocation2 + $0x238] sm:$0xff]
    %v136 = vld [vmem:[#allocation2 + $0x240] sm:$0xff]
    %v137 = vld [vmem:[#allocation2 + $0x248] sm:$0xff]
    %v138 = vld [vmem:[#allocation2 + $0x250] sm:$0xff]
    %v139 = vld [vmem:[#allocation2 + $0x258] sm:$0xff]
    %v140 = vld [vmem:[#allocation2 + $0x260] sm:$0xff]
    %v141 = vld [vmem:[#allocation2 + $0x268] sm:$0xff]
    %v142 = vld [vmem:[#allocation2 + $0x270] sm:$0xff]
    %v143 = vld [vmem:[#allocation2 + $0x278] sm:$0xff]
    %v144 = vld [vmem:[#allocation2 + $0x280] sm:$0xff]
    %v145 = vld [vmem:[#allocation2 + $0x288] sm:$0xff]
    %v146 = vld [vmem:[#allocation2 + $0x290] sm:$0xff]
    %v147 = vld [vmem:[#allocation2 + $0x298] sm:$0xff]
    %v148 = vld [vmem:[#allocation2 + $0x2a0] sm:$0xff]
    %v149 = vld [vmem:[#allocation2 + $0x2a8] sm:$0xff]
    %v150 = vld [vmem:[#allocation2 + $0x2b0] sm:$0xff]
    %v151 = vld [vmem:[#allocation2 + $0x2b8] sm:$0xff]
    %v152 = vld [vmem:[#allocation2 + $0x2c0] sm:$0xff]
    %v153 = vld [vmem:[#allocation2 + $0x2c8] sm:$0xff]
    %v154 = vld [vmem:[#allocation2 + $0x2d0] sm:$0xff]
    %v155 = vld [vmem:[#allocation2 + $0x2d8] sm:$0xff]
    %v156 = vld [vmem:[#allocation2 + $0x2e0] sm:$0xff]
    %v157 = vld [vmem:[#allocation2 + $0x2e8] sm:$0xff]
    %v158 = vld [vmem:[#allocation2 + $0x2f0] sm:$0xff]
    %v159 = vld [vmem:[#allocation2 + $0x2f8] sm:$0xff]
    %v160 = vld [vmem:[#allocation2 + $0x300] sm:$0xff]
    %v161 = vld [vmem:[#allocation2 + $0x308] sm:$0xff]
    %v162 = vld [vmem:[#allocation2 + $0x310] sm:$0xff]
    %v163 = vld [vmem:[#allocation2 + $0x318] sm:$0xff]
    %v164 = vld [vmem:[#allocation2 + $0x320] sm:$0xff]
    %v165 = vld [vmem:[#allocation2 + $0x328] sm:$0xff]
    %v166 = vld [vmem:[#allocation2 + $0x330] sm:$0xff]
    %v167 = vld [vmem:[#allocation2 + $0x338] sm:$0xff]
    %v168 = vld [vmem:[#allocation2 + $0x340] sm:$0xff]
    %v169 = vld [vmem:[#allocation2 + $0x348] sm:$0xff]
    %v170 = vld [vmem:[#allocation2 + $0x350] sm:$0xff]
    %v171 = vld [vmem:[#allocation2 + $0x358] sm:$0xff]
    %v172 = vld [vmem:[#allocation2 + $0x360] sm:$0xff]
    %v173 = vld [vmem:[#allocation2 + $0x368] sm:$0xff]
    %v174 = vld [vmem:[#allocation2 + $0x370] sm:$0xff]
    %v175 = vld [vmem:[#allocation2 + $0x378] sm:$0xff]
    %v176 = vld [vmem:[#allocation2 + $0x380] sm:$0xff]
    %v177 = vld [vmem:[#allocation2 + $0x388] sm:$0xff]
    %v178 = vld [vmem:[#allocation2 + $0x390] sm:$0xff]
    %v179 = vld [vmem:[#allocation2 + $0x398] sm:$0xff]
    %v180 = vld [vmem:[#allocation2 + $0x3a0] sm:$0xff]
    %v181 = vld [vmem:[#allocation2 + $0x3a8] sm:$0xff]
    %v182 = vld [vmem:[#allocation2 + $0x3b0] sm:$0xff]
    %v183 = vld [vmem:[#allocation2 + $0x3b8] sm:$0xff]
    %v184 = vld [vmem:[#allocation2 + $0x3c0] sm:$0xff]
    %v185 = vld [vmem:[#allocation2 + $0x3c8] sm:$0xff]
    %v186 = vld [vmem:[#allocation2 + $0x3d0] sm:$0xff]
    %v187 = vld [vmem:[#allocation2 + $0x3d8] sm:$0xff]
    %v188 = vld [vmem:[#allocation2 + $0x3e0] sm:$0xff]
    %v189 = vld [vmem:[#allocation2 + $0x3e8] sm:$0xff]
    %v190 = vld [vmem:[#allocation2 + $0x3f0] sm:$0xff]
    %v191 = vld [vmem:[#allocation2 + $0x3f8] sm:$0xff]
    %v192 = vld [vmem:[#allocation2 + $0x400] sm:$0xff]
    %v193 = vld [vmem:[#allocation2 + $0x408] sm:$0xff]
    %v194 = vld [vmem:[#allocation2 + $0x410] sm:$0xff]
    %v195 = vld [vmem:[#allocation2 + $0x418] sm:$0xff]
    %v196 = vld [vmem:[#allocation2 + $0x420] sm:$0xff]
    %v197 = vld [vmem:[#allocation2 + $0x428] sm:$0xff]
    %v198 = vld [vmem:[#allocation2 + $0x430] sm:$0xff]
    %v199 = vld [vmem:[#allocation2 + $0x438] sm:$0xff]
    %v200 = vld [vmem:[#allocation2 + $0x440] sm:$0xff]
    %v201 = vld [vmem:[#allocation2 + $0x448] sm:$0xff]
    %v202 = vld [vmem:[#allocation2 + $0x450] sm:$0xff]
    %v203 = vld [vmem:[#allocation2 + $0x458] sm:$0xff]
    %v204 = vld [vmem:[#allocation2 + $0x460] sm:$0xff]
    %v205 = vld [vmem:[#allocation2 + $0x468] sm:$0xff]
    %v206 = vld [vmem:[#allocation2 + $0x470] sm:$0xff]
    %v207 = vld [vmem:[#allocation2 + $0x478] sm:$0xff]
    %v208 = vld [vmem:[#allocation2 + $0x480] sm:$0xff]
    %v209 = vld [vmem:[#allocation2 + $0x488] sm:$0xff]
    %v210 = vld [vmem:[#allocation2 + $0x490] sm:$0xff]
    %v211 = vld [vmem:[#allocation2 + $0x498] sm:$0xff]
    %v212 = vld [vmem:[#allocation2 + $0x4a0] sm:$0xff]
    %v213 = vld [vmem:[#allocation2 + $0x4a8] sm:$0xff]
    %v214 = vld [vmem:[#allocation2 + $0x4b0] sm:$0xff]
    %v215 = vld [vmem:[#allocation2 + $0x4b8] sm:$0xff]
    %v216 = vld [vmem:[#allocation2 + $0x4c0] sm:$0xff]
    %v217 = vld [vmem:[#allocation2 + $0x4c8] sm:$0xff]
    %v218 = vld [vmem:[#allocation2 + $0x4d0] sm:$0xff]
    %v219 = vld [vmem:[#allocation2 + $0x4d8] sm:$0xff]
    %v220 = vld [vmem:[#allocation2 + $0x4e0] sm:$0xff]
    %v221 = vld [vmem:[#allocation2 + $0x4e8] sm:$0xff]
    %v222 = vld [vmem:[#allocation2 + $0x4f0] sm:$0xff]
    %v223 = vld [vmem:[#allocation2 + $0x4f8] sm:$0xff]
    %v224 = vld [vmem:[#allocation2 + $0x500] sm:$0xff]
    %v225 = vld [vmem:[#allocation2 + $0x508] sm:$0xff]
    %v226 = vld [vmem:[#allocation2 + $0x510] sm:$0xff]
    %v227 = vld [vmem:[#allocation2 + $0x518] sm:$0xff]
    %v228 = vld [vmem:[#allocation2 + $0x520] sm:$0xff]
    %v229 = vld [vmem:[#allocation2 + $0x528] sm:$0xff]
    %v230 = vld [vmem:[#allocation2 + $0x530] sm:$0xff]
    %v231 = vld [vmem:[#allocation2 + $0x538] sm:$0xff]
    %v232 = vld [vmem:[#allocation2 + $0x540] sm:$0xff]
    %v233 = vld [vmem:[#allocation2 + $0x548] sm:$0xff]
    %v234 = vld [vmem:[#allocation2 + $0x550] sm:$0xff]
    %v235 = vld [vmem:[#allocation2 + $0x558] sm:$0xff]
    %v236 = vld [vmem:[#allocation2 + $0x560] sm:$0xff]
    %v237 = vld [vmem:[#allocation2 + $0x568] sm:$0xff]
    %v238 = vld [vmem:[#allocation2 + $0x570] sm:$0xff]
    %v239 = vld [vmem:[#allocation2 + $0x578] sm:$0xff]
    %v240 = vld [vmem:[#allocation2 + $0x580] sm:$0xff]
    %v241 = vld [vmem:[#allocation2 + $0x588] sm:$0xff]
    %v242 = vld [vmem:[#allocation2 + $0x590] sm:$0xff]
    %v243 = vld [vmem:[#allocation2 + $0x598] sm:$0xff]
    %v244 = vld [vmem:[#allocation2 + $0x5a0] sm:$0xff]
    %v245 = vld [vmem:[#allocation2 + $0x5a8] sm:$0xff]
    %v246 = vld [vmem:[#allocation2 + $0x5b0] sm:$0xff]
    %v247 = vld [vmem:[#allocation2 + $0x5b8] sm:$0xff]
    %v248 = vld [vmem:[#allocation2 + $0x5c0] sm:$0xff]
    %v249 = vld [vmem:[#allocation2 + $0x5c8] sm:$0xff]
    %v250 = vld [vmem:[#allocation2 + $0x5d0] sm:$0xff]
    %v251 = vld [vmem:[#allocation2 + $0x5d8] sm:$0xff]
    %v252 = vld [vmem:[#allocation2 + $0x5e0] sm:$0xff]
    %v253 = vld [vmem:[#allocation2 + $0x5e8] sm:$0xff]
    %v254 = vld [vmem:[#allocation2 + $0x5f0] sm:$0xff]
    %v255 = vld [vmem:[#allocation2 + $0x5f8] sm:$0xff]
    %v256 = vld [vmem:[#allocation2 + $0x600] sm:$0xff]
    %v257 = vld [vmem:[#allocation2 + $0x608] sm:$0xff]
    %v258 = vld [vmem:[#allocation2 + $0x610] sm:$0xff]
    %v259 = vld [vmem:[#allocation2 + $0x618] sm:$0xff]
    %v260 = vld [vmem:[%s2] sm:$0xf]
    %v262 = vperm.slane %v260, 0
    %v263 = vperm.slane %v260, 1
    %v264 = vperm.slane %v260, 2
    %v265 = vperm.slane %v260, 3
    %v466 = vunpack.c.l.b16 %v64
    %v467 = vunpack.c.h.b16 %v64
    %v468 = vunpack.c.l.b16 %v65
    %v469 = vunpack.c.h.b16 %v65
    %v470 = vunpack.c.l.b16 %v66
    %v471 = vunpack.c.h.b16 %v66
    %v472 = vunpack.c.l.b16 %v67
    %v473 = vunpack.c.h.b16 %v67
    %v474 = vunpack.c.l.b16 %v68
    %v475 = vunpack.c.h.b16 %v68
    %v476 = vunpack.c.l.b16 %v69
    %v477 = vunpack.c.h.b16 %v69
    %v478 = vunpack.c.l.b16 %v70
    %v479 = vunpack.c.h.b16 %v70
    %v480 = vunpack.c.l.b16 %v71
    %v481 = vunpack.c.h.b16 %v71
    %v482 = vunpack.c.l.b16 %v72
    %v483 = vunpack.c.h.b16 %v72
    %v484 = vunpack.c.l.b16 %v73
    %v485 = vunpack.c.h.b16 %v73
    %v486 = vunpack.c.l.b16 %v74
    %v487 = vunpack.c.h.b16 %v74
    %v488 = vunpack.c.l.b16 %v75
    %v489 = vunpack.c.h.b16 %v75
    %v490 = vunpack.c.l.b16 %v76
    %v491 = vunpack.c.h.b16 %v76
    %v492 = vunpack.c.l.b16 %v77
    %v493 = vunpack.c.h.b16 %v77
    %v494 = vunpack.c.l.b16 %v78
    %v495 = vunpack.c.h.b16 %v78
    %v496 = vunpack.c.l.b16 %v79
    %v497 = vunpack.c.h.b16 %v79
    %v498 = vunpack.c.l.b16 %v80
    %v499 = vunpack.c.h.b16 %v80
    %v500 = vunpack.c.l.b16 %v81
    %v501 = vunpack.c.h.b16 %v81
    %v502 = vunpack.c.l.b16 %v82
    %v503 = vunpack.c.h.b16 %v82
    %v504 = vunpack.c.l.b16 %v83
    %v505 = vunpack.c.h.b16 %v83
    %v506 = vunpack.c.l.b16 %v84
    %v507 = vunpack.c.h.b16 %v84
    %v508 = vunpack.c.l.b16 %v85
    %v509 = vunpack.c.h.b16 %v85
    %v510 = vunpack.c.l.b16 %v86
    %v511 = vunpack.c.h.b16 %v86
    %v512 = vunpack.c.l.b16 %v87
    %v513 = vunpack.c.h.b16 %v87
    %v514 = vunpack.c.l.b16 %v88
    %v515 = vunpack.c.h.b16 %v88
    %v516 = vunpack.c.l.b16 %v89
    %v517 = vunpack.c.h.b16 %v89
    %v518 = vunpack.c.l.b16 %v90
    %v519 = vunpack.c.h.b16 %v90
    %v520 = vunpack.c.l.b16 %v91
    %v521 = vunpack.c.h.b16 %v91
    %v522 = vunpack.c.l.b16 %v92
    %v523 = vunpack.c.h.b16 %v92
    %v524 = vunpack.c.l.b16 %v93
    %v525 = vunpack.c.h.b16 %v93
    %v526 = vunpack.c.l.b16 %v94
    %v527 = vunpack.c.h.b16 %v94
    %v528 = vunpack.c.l.b16 %v95
    %v529 = vunpack.c.h.b16 %v95
    %v530 = vunpack.c.l.b16 %v96
    %v531 = vunpack.c.h.b16 %v96
    %v532 = vunpack.c.l.b16 %v97
    %v533 = vunpack.c.h.b16 %v97
    %v534 = vunpack.c.l.b16 %v98
    %v535 = vunpack.c.h.b16 %v98
    %v536 = vunpack.c.l.b16 %v99
    %v537 = vunpack.c.h.b16 %v99
    %v538 = vunpack.c.l.b16 %v100
    %v539 = vunpack.c.h.b16 %v100
    %v540 = vunpack.c.l.b16 %v101
    %v541 = vunpack.c.h.b16 %v101
    %v542 = vunpack.c.l.b16 %v102
    %v543 = vunpack.c.h.b16 %v102
    %v544 = vunpack.c.l.b16 %v103
    %v545 = vunpack.c.h.b16 %v103
    %v546 = vunpack.c.l.b16 %v104
    %v547 = vunpack.c.h.b16 %v104
    %v548 = vunpack.c.l.b16 %v105
    %v549 = vunpack.c.h.b16 %v105
    %v550 = vunpack.c.l.b16 %v106
    %v551 = vunpack.c.h.b16 %v106
    %v552 = vunpack.c.l.b16 %v107
    %v553 = vunpack.c.h.b16 %v107
    %v554 = vunpack.c.l.b16 %v108
    %v555 = vunpack.c.h.b16 %v108
    %v556 = vunpack.c.l.b16 %v109
    %v557 = vunpack.c.h.b16 %v109
    %v558 = vunpack.c.l.b16 %v110
    %v559 = vunpack.c.h.b16 %v110
    %v560 = vunpack.c.l.b16 %v111
    %v561 = vunpack.c.h.b16 %v111
    %v562 = vunpack.c.l.b16 %v112
    %v563 = vunpack.c.h.b16 %v112
    %v564 = vunpack.c.l.b16 %v113
    %v565 = vunpack.c.h.b16 %v113
    %v566 = vunpack.c.l.b16 %v114
    %v567 = vunpack.c.h.b16 %v114
    %v568 = vunpack.c.l.b16 %v115
    %v569 = vunpack.c.h.b16 %v115
    %v570 = vunpack.c.l.b16 %v116
    %v571 = vunpack.c.h.b16 %v116
    %v572 = vunpack.c.l.b16 %v117
    %v573 = vunpack.c.h.b16 %v117
    %v574 = vunpack.c.l.b16 %v118
    %v575 = vunpack.c.h.b16 %v118
    %v576 = vunpack.c.l.b16 %v119
    %v577 = vunpack.c.h.b16 %v119
    %v578 = vunpack.c.l.b16 %v120
    %v579 = vunpack.c.h.b16 %v120
    %v580 = vunpack.c.l.b16 %v121
    %v581 = vunpack.c.h.b16 %v121
    %v582 = vunpack.c.l.b16 %v122
    %v583 = vunpack.c.h.b16 %v122
    %v584 = vunpack.c.l.b16 %v123
    %v585 = vunpack.c.h.b16 %v123
    %v586 = vunpack.c.l.b16 %v124
    %v587 = vunpack.c.h.b16 %v124
    %v588 = vunpack.c.l.b16 %v125
    %v589 = vunpack.c.h.b16 %v125
    %v590 = vunpack.c.l.b16 %v126
    %v591 = vunpack.c.h.b16 %v126
    %v592 = vunpack.c.l.b16 %v127
    %v593 = vunpack.c.h.b16 %v127
    %v594 = vunpack.c.l.b16 %v128
    %v595 = vunpack.c.h.b16 %v128
    %v596 = vunpack.c.l.b16 %v129
    %v597 = vunpack.c.h.b16 %v129
    %v598 = vunpack.c.l.b16 %v130
    %v599 = vunpack.c.h.b16 %v130
    %v600 = vunpack.c.l.b16 %v131
    %v601 = vunpack.c.h.b16 %v131
    %v602 = vunpack.c.l.b16 %v132
    %v603 = vunpack.c.h.b16 %v132
    %v604 = vunpack.c.l.b16 %v133
    %v605 = vunpack.c.h.b16 %v133
    %v606 = vunpack.c.l.b16 %v134
    %v607 = vunpack.c.h.b16 %v134
    %v608 = vunpack.c.l.b16 %v135
    %v609 = vunpack.c.h.b16 %v135
    %v610 = vunpack.c.l.b16 %v136
    %v611 = vunpack.c.h.b16 %v136
    %v612 = vunpack.c.l.b16 %v137
    %v613 = vunpack.c.h.b16 %v137
    %v614 = vunpack.c.l.b16 %v138
    %v615 = vunpack.c.h.b16 %v138
    %v616 = vunpack.c.l.b16 %v139
    %v617 = vunpack.c.h.b16 %v139
    %v618 = vunpack.c.l.b16 %v140
    %v619 = vunpack.c.h.b16 %v140
    %v620 = vunpack.c.l.b16 %v141
    %v621 = vunpack.c.h.b16 %v141
    %v622 = vunpack.c.l.b16 %v142
    %v623 = vunpack.c.h.b16 %v142
    %v624 = vunpack.c.l.b16 %v143
    %v625 = vunpack.c.h.b16 %v143
    %v626 = vunpack.c.l.b16 %v144
    %v627 = vunpack.c.h.b16 %v144
    %v628 = vunpack.c.l.b16 %v145
    %v629 = vunpack.c.h.b16 %v145
    %v630 = vunpack.c.l.b16 %v146
    %v631 = vunpack.c.h.b16 %v146
    %v632 = vunpack.c.l.b16 %v147
    %v633 = vunpack.c.h.b16 %v147
    %v634 = vunpack.c.l.b16 %v148
    %v635 = vunpack.c.h.b16 %v148
    %v636 = vunpack.c.l.b16 %v149
    %v637 = vunpack.c.h.b16 %v149
    %v638 = vunpack.c.l.b16 %v150
    %v639 = vunpack.c.h.b16 %v150
    %v640 = vunpack.c.l.b16 %v151
    %v641 = vunpack.c.h.b16 %v151
    %v642 = vunpack.c.l.b16 %v152
    %v643 = vunpack.c.h.b16 %v152
    %v644 = vunpack.c.l.b16 %v153
    %v645 = vunpack.c.h.b16 %v153
    %v646 = vunpack.c.l.b16 %v154
    %v647 = vunpack.c.h.b16 %v154
    %v648 = vunpack.c.l.b16 %v155
    %v649 = vunpack.c.h.b16 %v155
    %v650 = vunpack.c.l.b16 %v156
    %v651 = vunpack.c.h.b16 %v156
    %v652 = vunpack.c.l.b16 %v157
    %v653 = vunpack.c.h.b16 %v157
    %v654 = vunpack.c.l.b16 %v158
    %v655 = vunpack.c.h.b16 %v158
    %v656 = vunpack.c.l.b16 %v159
    %v657 = vunpack.c.h.b16 %v159
    %v658 = vunpack.c.l.b16 %v160
    %v659 = vunpack.c.h.b16 %v160
    %v660 = vunpack.c.l.b16 %v161
    %v661 = vunpack.c.h.b16 %v161
    %v662 = vunpack.c.l.b16 %v162
    %v663 = vunpack.c.h.b16 %v162
    %v664 = vunpack.c.l.b16 %v163
    %v665 = vunpack.c.h.b16 %v163
    %v666 = vunpack.c.l.b16 %v164
    %v667 = vunpack.c.h.b16 %v164
    %v668 = vunpack.c.l.b16 %v165
    %v669 = vunpack.c.h.b16 %v165
    %v670 = vunpack.c.l.b16 %v166
    %v671 = vunpack.c.h.b16 %v166
    %v672 = vunpack.c.l.b16 %v167
    %v673 = vunpack.c.h.b16 %v167
    %v674 = vunpack.c.l.b16 %v168
    %v675 = vunpack.c.h.b16 %v168
    %v676 = vunpack.c.l.b16 %v169
    %v677 = vunpack.c.h.b16 %v169
    %v678 = vunpack.c.l.b16 %v170
    %v679 = vunpack.c.h.b16 %v170
    %v680 = vunpack.c.l.b16 %v171
    %v681 = vunpack.c.h.b16 %v171
    %v682 = vunpack.c.l.b16 %v172
    %v683 = vunpack.c.h.b16 %v172
    %v684 = vunpack.c.l.b16 %v173
    %v685 = vunpack.c.h.b16 %v173
    %v686 = vunpack.c.l.b16 %v174
    %v687 = vunpack.c.h.b16 %v174
    %v688 = vunpack.c.l.b16 %v175
    %v689 = vunpack.c.h.b16 %v175
    %v690 = vunpack.c.l.b16 %v176
    %v691 = vunpack.c.h.b16 %v176
    %v692 = vunpack.c.l.b16 %v177
    %v693 = vunpack.c.h.b16 %v177
    %v694 = vunpack.c.l.b16 %v178
    %v695 = vunpack.c.h.b16 %v178
    %v696 = vunpack.c.l.b16 %v179
    %v697 = vunpack.c.h.b16 %v179
    %v698 = vunpack.c.l.b16 %v180
    %v699 = vunpack.c.h.b16 %v180
    %v700 = vunpack.c.l.b16 %v181
    %v701 = vunpack.c.h.b16 %v181
    %v702 = vunpack.c.l.b16 %v182
    %v703 = vunpack.c.h.b16 %v182
    %v704 = vunpack.c.l.b16 %v183
    %v705 = vunpack.c.h.b16 %v183
    %v706 = vunpack.c.l.b16 %v184
    %v707 = vunpack.c.h.b16 %v184
    %v708 = vunpack.c.l.b16 %v185
    %v709 = vunpack.c.h.b16 %v185
    %v710 = vunpack.c.l.b16 %v186
    %v711 = vunpack.c.h.b16 %v186
    %v712 = vunpack.c.l.b16 %v187
    %v713 = vunpack.c.h.b16 %v187
    %v714 = vunpack.c.l.b16 %v188
    %v715 = vunpack.c.h.b16 %v188
    %v716 = vunpack.c.l.b16 %v189
    %v717 = vunpack.c.h.b16 %v189
    %v718 = vunpack.c.l.b16 %v190
    %v719 = vunpack.c.h.b16 %v190
    %v720 = vunpack.c.l.b16 %v191
    %v721 = vunpack.c.h.b16 %v191
    %v722 = vunpack.c.l.b16 %v192
    %v723 = vunpack.c.h.b16 %v192
    %v724 = vunpack.c.l.b16 %v193
    %v725 = vunpack.c.h.b16 %v193
    %v726 = vunpack.c.l.b16 %v194
    %v727 = vunpack.c.h.b16 %v194
    %v728 = vunpack.c.l.b16 %v195
    %v729 = vunpack.c.h.b16 %v195
    %v730 = vunpack.c.l.b16 %v196
    %v731 = vunpack.c.h.b16 %v196
    %v732 = vunpack.c.l.b16 %v197
    %v733 = vunpack.c.h.b16 %v197
    %v734 = vunpack.c.l.b16 %v198
    %v735 = vunpack.c.h.b16 %v198
    %v736 = vunpack.c.l.b16 %v199
    %v737 = vunpack.c.h.b16 %v199
    %v738 = vunpack.c.l.b16 %v200
    %v739 = vunpack.c.h.b16 %v200
    %v740 = vunpack.c.l.b16 %v201
    %v741 = vunpack.c.h.b16 %v201
    %v742 = vunpack.c.l.b16 %v202
    %v743 = vunpack.c.h.b16 %v202
    %v744 = vunpack.c.l.b16 %v203
    %v745 = vunpack.c.h.b16 %v203
    %v746 = vunpack.c.l.b16 %v204
    %v747 = vunpack.c.h.b16 %v204
    %v748 = vunpack.c.l.b16 %v205
    %v749 = vunpack.c.h.b16 %v205
    %v750 = vunpack.c.l.b16 %v206
    %v751 = vunpack.c.h.b16 %v206
    %v752 = vunpack.c.l.b16 %v207
    %v753 = vunpack.c.h.b16 %v207
    %v754 = vunpack.c.l.b16 %v208
    %v755 = vunpack.c.h.b16 %v208
    %v756 = vunpack.c.l.b16 %v209
    %v757 = vunpack.c.h.b16 %v209
    %v758 = vunpack.c.l.b16 %v210
    %v759 = vunpack.c.h.b16 %v210
    %v760 = vunpack.c.l.b16 %v211
    %v761 = vunpack.c.h.b16 %v211
    %v762 = vunpack.c.l.b16 %v212
    %v763 = vunpack.c.h.b16 %v212
    %v764 = vunpack.c.l.b16 %v213
    %v765 = vunpack.c.h.b16 %v213
    %v766 = vunpack.c.l.b16 %v214
    %v767 = vunpack.c.h.b16 %v214
    %v768 = vunpack.c.l.b16 %v215
    %v769 = vunpack.c.h.b16 %v215
    %v770 = vunpack.c.l.b16 %v216
    %v771 = vunpack.c.h.b16 %v216
    %v772 = vunpack.c.l.b16 %v217
    %v773 = vunpack.c.h.b16 %v217
    %v774 = vunpack.c.l.b16 %v218
    %v775 = vunpack.c.h.b16 %v218
    %v776 = vunpack.c.l.b16 %v219
    %v777 = vunpack.c.h.b16 %v219
    %v778 = vunpack.c.l.b16 %v220
    %v779 = vunpack.c.h.b16 %v220
    %v780 = vunpack.c.l.b16 %v221
    %v781 = vunpack.c.h.b16 %v221
    %v782 = vunpack.c.l.b16 %v222
    %v783 = vunpack.c.h.b16 %v222
    %v784 = vunpack.c.l.b16 %v223
    %v785 = vunpack.c.h.b16 %v223
    %v786 = vunpack.c.l.b16 %v224
    %v787 = vunpack.c.h.b16 %v224
    %v788 = vunpack.c.l.b16 %v225
    %v789 = vunpack.c.h.b16 %v225
    %v790 = vunpack.c.l.b16 %v226
    %v791 = vunpack.c.h.b16 %v226
    %v792 = vunpack.c.l.b16 %v227
    %v793 = vunpack.c.h.b16 %v227
    %v794 = vunpack.c.l.b16 %v228
    %v795 = vunpack.c.h.b16 %v228
    %v796 = vunpack.c.l.b16 %v229
    %v797 = vunpack.c.h.b16 %v229
    %v798 = vunpack.c.l.b16 %v230
    %v799 = vunpack.c.h.b16 %v230
    %v800 = vunpack.c.l.b16 %v231
    %v801 = vunpack.c.h.b16 %v231
    %v802 = vunpack.c.l.b16 %v232
    %v803 = vunpack.c.h.b16 %v232
    %v804 = vunpack.c.l.b16 %v233
    %v805 = vunpack.c.h.b16 %v233
    %v806 = vunpack.c.l.b16 %v234
    %v807 = vunpack.c.h.b16 %v234
    %v808 = vunpack.c.l.b16 %v235
    %v809 = vunpack.c.h.b16 %v235
    %v810 = vunpack.c.l.b16 %v236
    %v811 = vunpack.c.h.b16 %v236
    %v812 = vunpack.c.l.b16 %v237
    %v813 = vunpack.c.h.b16 %v237
    %v814 = vunpack.c.l.b16 %v238
    %v815 = vunpack.c.h.b16 %v238
    %v816 = vunpack.c.l.b16 %v239
    %v817 = vunpack.c.h.b16 %v239
    %v818 = vunpack.c.l.b16 %v240
    %v819 = vunpack.c.h.b16 %v240
    %v820 = vunpack.c.l.b16 %v241
    %v821 = vunpack.c.h.b16 %v241
    %v822 = vunpack.c.l.b16 %v242
    %v823 = vunpack.c.h.b16 %v242
    %v824 = vunpack.c.l.b16 %v243
    %v825 = vunpack.c.h.b16 %v243
    %v826 = vunpack.c.l.b16 %v244
    %v827 = vunpack.c.h.b16 %v244
    %v828 = vunpack.c.l.b16 %v245
    %v829 = vunpack.c.h.b16 %v245
    %v830 = vunpack.c.l.b16 %v246
    %v831 = vunpack.c.h.b16 %v246
    %v832 = vunpack.c.l.b16 %v247
    %v833 = vunpack.c.h.b16 %v247
    %v834 = vunpack.c.l.b16 %v248
    %v835 = vunpack.c.h.b16 %v248
    %v836 = vunpack.c.l.b16 %v249
    %v837 = vunpack.c.h.b16 %v249
    %v838 = vunpack.c.l.b16 %v250
    %v839 = vunpack.c.h.b16 %v250
    %v840 = vunpack.c.l.b16 %v251
    %v841 = vunpack.c.h.b16 %v251
    %v842 = vunpack.c.l.b16 %v252
    %v843 = vunpack.c.h.b16 %v252
    %v844 = vunpack.c.l.b16 %v253
    %v845 = vunpack.c.h.b16 %v253
    %v846 = vunpack.c.l.b16 %v254
    %v847 = vunpack.c.h.b16 %v254
    %v848 = vunpack.c.l.b16 %v255
    %v849 = vunpack.c.h.b16 %v255
    %v850 = vunpack.c.l.b16 %v256
    %v851 = vunpack.c.h.b16 %v256
    %v852 = vunpack.c.l.b16 %v257
    %v853 = vunpack.c.h.b16 %v257
    %v854 = vunpack.c.l.b16 %v258
    %v855 = vunpack.c.h.b16 %v258
    %v856 = vunpack.c.l.b16 %v259
    %v857 = vunpack.c.h.b16 %v259
    %v858 = vpack.c.b16 %v470, %v466
    %v859 = vpack.c.b16 %v471, %v467
    %v860 = vpack.c.b16 %v472, %v468
    %v861 = vpack.c.b16 %v473, %v469
    %v862 = vpack.c.b16 %v478, %v474
    %v863 = vpack.c.b16 %v479, %v475
    %v864 = vpack.c.b16 %v480, %v476
    %v865 = vpack.c.b16 %v481, %v477
    %v866 = vpack.c.b16 %v486, %v482
    %v867 = vpack.c.b16 %v487, %v483
    %v868 = vpack.c.b16 %v488, %v484
    %v869 = vpack.c.b16 %v489, %v485
    %v870 = vpack.c.b16 %v494, %v490
    %v871 = vpack.c.b16 %v495, %v491
    %v872 = vpack.c.b16 %v496, %v492
    %v873 = vpack.c.b16 %v497, %v493
    %v874 = vpack.c.b16 %v502, %v498
    %v875 = vpack.c.b16 %v503, %v499
    %v876 = vpack.c.b16 %v504, %v500
    %v877 = vpack.c.b16 %v505, %v501
    %v878 = vpack.c.b16 %v510, %v506
    %v879 = vpack.c.b16 %v511, %v507
    %v880 = vpack.c.b16 %v512, %v508
    %v881 = vpack.c.b16 %v513, %v509
    %v882 = vpack.c.b16 %v518, %v514
    %v883 = vpack.c.b16 %v519, %v515
    %v884 = vpack.c.b16 %v520, %v516
    %v885 = vpack.c.b16 %v521, %v517
    %v886 = vpack.c.b16 %v526, %v522
    %v887 = vpack.c.b16 %v527, %v523
    %v888 = vpack.c.b16 %v528, %v524
    %v889 = vpack.c.b16 %v529, %v525
    %v890 = vpack.c.b16 %v534, %v530
    %v891 = vpack.c.b16 %v535, %v531
    %v892 = vpack.c.b16 %v536, %v532
    %v893 = vpack.c.b16 %v537, %v533
    %v894 = vpack.c.b16 %v542, %v538
    %v895 = vpack.c.b16 %v543, %v539
    %v896 = vpack.c.b16 %v544, %v540
    %v897 = vpack.c.b16 %v545, %v541
    %v898 = vpack.c.b16 %v550, %v546
    %v899 = vpack.c.b16 %v551, %v547
    %v900 = vpack.c.b16 %v552, %v548
    %v901 = vpack.c.b16 %v553, %v549
    %v902 = vpack.c.b16 %v558, %v554
    %v903 = vpack.c.b16 %v559, %v555
    %v904 = vpack.c.b16 %v560, %v556
    %v905 = vpack.c.b16 %v561, %v557
    %v906 = vpack.c.b16 %v566, %v562
    %v907 = vpack.c.b16 %v567, %v563
    %v908 = vpack.c.b16 %v568, %v564
    %v909 = vpack.c.b16 %v569, %v565
    %v910 = vpack.c.b16 %v574, %v570
    %v911 = vpack.c.b16 %v575, %v571
    %v912 = vpack.c.b16 %v576, %v572
    %v913 = vpack.c.b16 %v577, %v573
    %v914 = vpack.c.b16 %v582, %v578
    %v915 = vpack.c.b16 %v583, %v579
    %v916 = vpack.c.b16 %v584, %v580
    %v917 = vpack.c.b16 %v585, %v581
    %v918 = vpack.c.b16 %v590, %v586
    %v919 = vpack.c.b16 %v591, %v587
    %v920 = vpack.c.b16 %v592, %v588
    %v921 = vpack.c.b16 %v593, %v589
    %v922 = vpack.c.b16 %v598, %v594
    %v923 = vpack.c.b16 %v599, %v595
    %v924 = vpack.c.b16 %v600, %v596
    %v925 = vpack.c.b16 %v601, %v597
    %v926 = vpack.c.b16 %v606, %v602
    %v927 = vpack.c.b16 %v607, %v603
    %v928 = vpack.c.b16 %v608, %v604
    %v929 = vpack.c.b16 %v609, %v605
    %v930 = vpack.c.b16 %v614, %v610
    %v931 = vpack.c.b16 %v615, %v611
    %v932 = vpack.c.b16 %v616, %v612
    %v933 = vpack.c.b16 %v617, %v613
    %v934 = vpack.c.b16 %v622, %v618
    %v935 = vpack.c.b16 %v623, %v619
    %v936 = vpack.c.b16 %v624, %v620
    %v937 = vpack.c.b16 %v625, %v621
    %v938 = vpack.c.b16 %v630, %v626
    %v939 = vpack.c.b16 %v631, %v627
    %v940 = vpack.c.b16 %v632, %v628
    %v941 = vpack.c.b16 %v633, %v629
    %v942 = vpack.c.b16 %v638, %v634
    %v943 = vpack.c.b16 %v639, %v635
    %v944 = vpack.c.b16 %v640, %v636
    %v945 = vpack.c.b16 %v641, %v637
    %v946 = vpack.c.b16 %v646, %v642
    %v947 = vpack.c.b16 %v647, %v643
    %v948 = vpack.c.b16 %v648, %v644
    %v949 = vpack.c.b16 %v649, %v645
    %v950 = vpack.c.b16 %v654, %v650
    %v951 = vpack.c.b16 %v655, %v651
    %v952 = vpack.c.b16 %v656, %v652
    %v953 = vpack.c.b16 %v657, %v653
    %v954 = vpack.c.b16 %v662, %v658
    %v955 = vpack.c.b16 %v663, %v659
    %v956 = vpack.c.b16 %v664, %v660
    %v957 = vpack.c.b16 %v665, %v661
    %v958 = vpack.c.b16 %v670, %v666
    %v959 = vpack.c.b16 %v671, %v667
    %v960 = vpack.c.b16 %v672, %v668
    %v961 = vpack.c.b16 %v673, %v669
    %v962 = vpack.c.b16 %v678, %v674
    %v963 = vpack.c.b16 %v679, %v675
    %v964 = vpack.c.b16 %v680, %v676
    %v965 = vpack.c.b16 %v681, %v677
    %v966 = vpack.c.b16 %v686, %v682
    %v967 = vpack.c.b16 %v687, %v683
    %v968 = vpack.c.b16 %v688, %v684
    %v969 = vpack.c.b16 %v689, %v685
    %v970 = vpack.c.b16 %v694, %v690
    %v971 = vpack.c.b16 %v695, %v691
    %v972 = vpack.c.b16 %v696, %v692
    %v973 = vpack.c.b16 %v697, %v693
    %v974 = vpack.c.b16 %v702, %v698
    %v975 = vpack.c.b16 %v703, %v699
    %v976 = vpack.c.b16 %v704, %v700
    %v977 = vpack.c.b16 %v705, %v701
    %v978 = vpack.c.b16 %v710, %v706
    %v979 = vpack.c.b16 %v711, %v707
    %v980 = vpack.c.b16 %v712, %v708
    %v981 = vpack.c.b16 %v713, %v709
    %v982 = vpack.c.b16 %v718, %v714
    %v983 = vpack.c.b16 %v719, %v715
    %v984 = vpack.c.b16 %v720, %v716
    %v985 = vpack.c.b16 %v721, %v717
    %v986 = vpack.c.b16 %v726, %v722
    %v987 = vpack.c.b16 %v727, %v723
    %v988 = vpack.c.b16 %v728, %v724
    %v989 = vpack.c.b16 %v729, %v725
    %v990 = vpack.c.b16 %v734, %v730
    %v991 = vpack.c.b16 %v735, %v731
    %v992 = vpack.c.b16 %v736, %v732
    %v993 = vpack.c.b16 %v737, %v733
    %v994 = vpack.c.b16 %v742, %v738
    %v995 = vpack.c.b16 %v743, %v739
    %v996 = vpack.c.b16 %v744, %v740
    %v997 = vpack.c.b16 %v745, %v741
    %v998 = vpack.c.b16 %v750, %v746
    %v999 = vpack.c.b16 %v751, %v747
    %v1000 = vpack.c.b16 %v752, %v748
    %v1001 = vpack.c.b16 %v753, %v749
    %v1002 = vpack.c.b16 %v758, %v754
    %v1003 = vpack.c.b16 %v759, %v755
    %v1004 = vpack.c.b16 %v760, %v756
    %v1005 = vpack.c.b16 %v761, %v757
    %v1006 = vpack.c.b16 %v766, %v762
    %v1007 = vpack.c.b16 %v767, %v763
    %v1008 = vpack.c.b16 %v768, %v764
    %v1009 = vpack.c.b16 %v769, %v765
    %v1010 = vpack.c.b16 %v774, %v770
    %v1011 = vpack.c.b16 %v775, %v771
    %v1012 = vpack.c.b16 %v776, %v772
    %v1013 = vpack.c.b16 %v777, %v773
    %v1014 = vpack.c.b16 %v782, %v778
    %v1015 = vpack.c.b16 %v783, %v779
    %v1016 = vpack.c.b16 %v784, %v780
    %v1017 = vpack.c.b16 %v785, %v781
    %v1018 = vpack.c.b16 %v790, %v786
    %v1019 = vpack.c.b16 %v791, %v787
    %v1020 = vpack.c.b16 %v792, %v788
    %v1021 = vpack.c.b16 %v793, %v789
    %v1022 = vpack.c.b16 %v798, %v794
    %v1023 = vpack.c.b16 %v799, %v795
    %v1024 = vpack.c.b16 %v800, %v796
    %v1025 = vpack.c.b16 %v801, %v797
    %v1026 = vpack.c.b16 %v806, %v802
    %v1027 = vpack.c.b16 %v807, %v803
    %v1028 = vpack.c.b16 %v808, %v804
    %v1029 = vpack.c.b16 %v809, %v805
    %v1030 = vpack.c.b16 %v814, %v810
    %v1031 = vpack.c.b16 %v815, %v811
    %v1032 = vpack.c.b16 %v816, %v812
    %v1033 = vpack.c.b16 %v817, %v813
    %v1034 = vpack.c.b16 %v822, %v818
    %v1035 = vpack.c.b16 %v823, %v819
    %v1036 = vpack.c.b16 %v824, %v820
    %v1037 = vpack.c.b16 %v825, %v821
    %v1038 = vpack.c.b16 %v830, %v826
    %v1039 = vpack.c.b16 %v831, %v827
    %v1040 = vpack.c.b16 %v832, %v828
    %v1041 = vpack.c.b16 %v833, %v829
    %v1042 = vpack.c.b16 %v838, %v834
    %v1043 = vpack.c.b16 %v839, %v835
    %v1044 = vpack.c.b16 %v840, %v836
    %v1045 = vpack.c.b16 %v841, %v837
    %v1046 = vpack.c.b16 %v846, %v842
    %v1047 = vpack.c.b16 %v847, %v843
    %v1048 = vpack.c.b16 %v848, %v844
    %v1049 = vpack.c.b16 %v849, %v845
    %v1050 = vpack.c.b16 %v854, %v850
    %v1051 = vpack.c.b16 %v855, %v851
    %v1052 = vpack.c.b16 %v856, %v852
    %v1053 = vpack.c.b16 %v857, %v853
    %vm1250 = vcmask 130048
    %v1252 = vsel %vm1250, %v63, 0
    %1254 = vmatpush.bf16.msra.mxu0 %v886
    %1255 = vmatpush.bf16.msra.mxu0 %v882
    %1256 = vmatpush.bf16.msra.mxu0 %v878
    %1257 = vmatpush.bf16.msra.mxu0 %v874
    %1258 = vmatpush.bf16.msra.mxu0 %v870
    %1259 = vmatpush.bf16.msra.mxu0 %v866
    %1260 = vmatpush.bf16.msra.mxu0 %v862
    %1261 = vmatpush.bf16.msra.mxu0 %v858
    %1262 = vmatmul.bf16.gmra.mxu0 %v57
    %v1263 = vpop.f32.mrf.mxu0
    %v1264 = vadd.f32 %v262, %v1263
    %v1265 = vpop.f32.mrf.mxu0
    %1266 = vdwg.mxu0
    %1267 = vmatpush.bf16.msra.mxu0 %v918
    %1268 = vmatpush.bf16.msra.mxu0 %v914
    %1269 = vmatpush.bf16.msra.mxu0 %v910
    %1270 = vmatpush.bf16.msra.mxu0 %v906
    %1271 = vmatpush.bf16.msra.mxu0 %v902
    %1272 = vmatpush.bf16.msra.mxu0 %v898
    %1273 = vmatpush.bf16.msra.mxu0 %v894
    %1274 = vmatpush.bf16.msra.mxu0 %v890
    %1275 = vmatmul.bf16.gmra.mxu0 %v58
    %v1276 = vpop.f32.mrf.mxu0
    %v1277 = vadd.f32 %v1264, %v1276
    %v1278 = vpop.f32.mrf.mxu0
    %1279 = vdwg.mxu0
    %1280 = vmatpush.bf16.msra.mxu0 %v950
    %1281 = vmatpush.bf16.msra.mxu0 %v946
    %1282 = vmatpush.bf16.msra.mxu0 %v942
    %1283 = vmatpush.bf16.msra.mxu0 %v938
    %1284 = vmatpush.bf16.msra.mxu0 %v934
    %1285 = vmatpush.bf16.msra.mxu0 %v930
    %1286 = vmatpush.bf16.msra.mxu0 %v926
    %1287 = vmatpush.bf16.msra.mxu0 %v922
    %1288 = vmatmul.bf16.gmra.mxu0 %v59
    %v1289 = vpop.f32.mrf.mxu0
    %v1290 = vadd.f32 %v1277, %v1289
    %v1291 = vpop.f32.mrf.mxu0
    %1292 = vdwg.mxu0
    %1293 = vmatpush.bf16.msra.mxu0 %v982
    %1294 = vmatpush.bf16.msra.mxu0 %v978
    %1295 = vmatpush.bf16.msra.mxu0 %v974
    %1296 = vmatpush.bf16.msra.mxu0 %v970
    %1297 = vmatpush.bf16.msra.mxu0 %v966
    %1298 = vmatpush.bf16.msra.mxu0 %v962
    %1299 = vmatpush.bf16.msra.mxu0 %v958
    %1300 = vmatpush.bf16.msra.mxu0 %v954
    %1301 = vmatmul.bf16.gmra.mxu0 %v60
    %v1302 = vpop.f32.mrf.mxu0
    %v1303 = vadd.f32 %v1290, %v1302
    %v1304 = vpop.f32.mrf.mxu0
    %1305 = vdwg.mxu0
    %1306 = vmatpush.bf16.msra.mxu0 %v1014
    %1307 = vmatpush.bf16.msra.mxu0 %v1010
    %1308 = vmatpush.bf16.msra.mxu0 %v1006
    %1309 = vmatpush.bf16.msra.mxu0 %v1002
    %1310 = vmatpush.bf16.msra.mxu0 %v998
    %1311 = vmatpush.bf16.msra.mxu0 %v994
    %1312 = vmatpush.bf16.msra.mxu0 %v990
    %1313 = vmatpush.bf16.msra.mxu0 %v986
    %1314 = vmatmul.bf16.gmra.mxu0 %v61
    %v1315 = vpop.f32.mrf.mxu0
    %v1316 = vadd.f32 %v1303, %v1315
    %v1317 = vpop.f32.mrf.mxu0
    %1318 = vdwg.mxu0
    %1319 = vmatpush.bf16.msra.mxu0 %v1046
    %1320 = vmatpush.bf16.msra.mxu0 %v1042
    %1321 = vmatpush.bf16.msra.mxu0 %v1038
    %1322 = vmatpush.bf16.msra.mxu0 %v1034
    %1323 = vmatpush.bf16.msra.mxu0 %v1030
    %1324 = vmatpush.bf16.msra.mxu0 %v1026
    %1325 = vmatpush.bf16.msra.mxu0 %v1022
    %1326 = vmatpush.bf16.msra.mxu0 %v1018
    %1327 = vmatmul.bf16.gmra.mxu0 %v62
    %v1328 = vpop.f32.mrf.mxu0
    %v1329 = vadd.f32 %v1316, %v1328
    %v1330 = vpop.f32.mrf.mxu0
    %1331 = vdwg.mxu0
    %1332 = vmatpush.bf16.msra.mxu0 0
    %1333 = vmatpush.bf16.msra.mxu0 0
    %1334 = vmatpush.bf16.msra.mxu0 0
    %1335 = vmatpush.bf16.msra.mxu0 0
    %1336 = vmatpush.bf16.msra.mxu0 0
    %1337 = vmatpush.bf16.msra.mxu0 0
    %1338 = vmatpush.bf16.msra.mxu0 0
    %1339 = vmatpush.bf16.msra.mxu0 %v1050
    %1340 = vmatmul.bf16.gmra.mxu0 %v1252
    %v1341 = vpop.f32.mrf.mxu0
    %v1342 = vadd.f32 %v1329, %v1341
    %v1343 = vpop.f32.mrf.mxu0
    %1344 = vdwg.mxu0
    %1345 = vmatpush.bf16.msra.mxu0 %v887
    %1346 = vmatpush.bf16.msra.mxu0 %v883
    %1347 = vmatpush.bf16.msra.mxu0 %v879
    %1348 = vmatpush.bf16.msra.mxu0 %v875
    %1349 = vmatpush.bf16.msra.mxu0 %v871
    %1350 = vmatpush.bf16.msra.mxu0 %v867
    %1351 = vmatpush.bf16.msra.mxu0 %v863
    %1352 = vmatpush.bf16.msra.mxu0 %v859
    %1353 = vmatmul.bf16.gmra.mxu0 %v57
    %v1354 = vpop.f32.mrf.mxu0
    %v1355 = vadd.f32 %v263, %v1354
    %v1356 = vpop.f32.mrf.mxu0
    %1357 = vdwg.mxu0
    %1358 = vmatpush.bf16.msra.mxu0 %v919
    %1359 = vmatpush.bf16.msra.mxu0 %v915
    %1360 = vmatpush.bf16.msra.mxu0 %v911
    %1361 = vmatpush.bf16.msra.mxu0 %v907
    %1362 = vmatpush.bf16.msra.mxu0 %v903
    %1363 = vmatpush.bf16.msra.mxu0 %v899
    %1364 = vmatpush.bf16.msra.mxu0 %v895
    %1365 = vmatpush.bf16.msra.mxu0 %v891
    %1366 = vmatmul.bf16.gmra.mxu0 %v58
    %v1367 = vpop.f32.mrf.mxu0
    %v1368 = vadd.f32 %v1355, %v1367
    %v1369 = vpop.f32.mrf.mxu0
    %1370 = vdwg.mxu0
    %1371 = vmatpush.bf16.msra.mxu0 %v951
    %1372 = vmatpush.bf16.msra.mxu0 %v947
    %1373 = vmatpush.bf16.msra.mxu0 %v943
    %1374 = vmatpush.bf16.msra.mxu0 %v939
    %1375 = vmatpush.bf16.msra.mxu0 %v935
    %1376 = vmatpush.bf16.msra.mxu0 %v931
    %1377 = vmatpush.bf16.msra.mxu0 %v927
    %1378 = vmatpush.bf16.msra.mxu0 %v923
    %1379 = vmatmul.bf16.gmra.mxu0 %v59
    %v1380 = vpop.f32.mrf.mxu0
    %v1381 = vadd.f32 %v1368, %v1380
    %v1382 = vpop.f32.mrf.mxu0
    %1383 = vdwg.mxu0
    %1384 = vmatpush.bf16.msra.mxu0 %v983
    %1385 = vmatpush.bf16.msra.mxu0 %v979
    %1386 = vmatpush.bf16.msra.mxu0 %v975
    %1387 = vmatpush.bf16.msra.mxu0 %v971
    %1388 = vmatpush.bf16.msra.mxu0 %v967
    %1389 = vmatpush.bf16.msra.mxu0 %v963
    %1390 = vmatpush.bf16.msra.mxu0 %v959
    %1391 = vmatpush.bf16.msra.mxu0 %v955
    %1392 = vmatmul.bf16.gmra.mxu0 %v60
    %v1393 = vpop.f32.mrf.mxu0
    %v1394 = vadd.f32 %v1381, %v1393
    %v1395 = vpop.f32.mrf.mxu0
    %1396 = vdwg.mxu0
    %1397 = vmatpush.bf16.msra.mxu0 %v1015
    %1398 = vmatpush.bf16.msra.mxu0 %v1011
    %1399 = vmatpush.bf16.msra.mxu0 %v1007
    %1400 = vmatpush.bf16.msra.mxu0 %v1003
    %1401 = vmatpush.bf16.msra.mxu0 %v999
    %1402 = vmatpush.bf16.msra.mxu0 %v995
    %1403 = vmatpush.bf16.msra.mxu0 %v991
    %1404 = vmatpush.bf16.msra.mxu0 %v987
    %1405 = vmatmul.bf16.gmra.mxu0 %v61
    %v1406 = vpop.f32.mrf.mxu0
    %v1407 = vadd.f32 %v1394, %v1406
    %v1408 = vpop.f32.mrf.mxu0
    %1409 = vdwg.mxu0
    %1410 = vmatpush.bf16.msra.mxu0 %v1047
    %1411 = vmatpush.bf16.msra.mxu0 %v1043
    %1412 = vmatpush.bf16.msra.mxu0 %v1039
    %1413 = vmatpush.bf16.msra.mxu0 %v1035
    %1414 = vmatpush.bf16.msra.mxu0 %v1031
    %1415 = vmatpush.bf16.msra.mxu0 %v1027
    %1416 = vmatpush.bf16.msra.mxu0 %v1023
    %1417 = vmatpush.bf16.msra.mxu0 %v1019
    %1418 = vmatmul.bf16.gmra.mxu0 %v62
    %v1419 = vpop.f32.mrf.mxu0
    %v1420 = vadd.f32 %v1407, %v1419
    %v1421 = vpop.f32.mrf.mxu0
    %1422 = vdwg.mxu0
    %1423 = vmatpush.bf16.msra.mxu0 0
    %1424 = vmatpush.bf16.msra.mxu0 0
    %1425 = vmatpush.bf16.msra.mxu0 0
    %1426 = vmatpush.bf16.msra.mxu0 0
    %1427 = vmatpush.bf16.msra.mxu0 0
    %1428 = vmatpush.bf16.msra.mxu0 0
    %1429 = vmatpush.bf16.msra.mxu0 0
    %1430 = vmatpush.bf16.msra.mxu0 %v1051
    %1431 = vmatmul.bf16.gmra.mxu0 %v1252
    %v1432 = vpop.f32.mrf.mxu0
    %v1433 = vadd.f32 %v1420, %v1432
    %v1434 = vpop.f32.mrf.mxu0
    %1435 = vdwg.mxu0
    %1436 = vmatpush.bf16.msra.mxu0 %v888
    %1437 = vmatpush.bf16.msra.mxu0 %v884
    %1438 = vmatpush.bf16.msra.mxu0 %v880
    %1439 = vmatpush.bf16.msra.mxu0 %v876
    %1440 = vmatpush.bf16.msra.mxu0 %v872
    %1441 = vmatpush.bf16.msra.mxu0 %v868
    %1442 = vmatpush.bf16.msra.mxu0 %v864
    %1443 = vmatpush.bf16.msra.mxu0 %v860
    %1444 = vmatmul.bf16.gmra.mxu0 %v57
    %v1445 = vpop.f32.mrf.mxu0
    %v1446 = vadd.f32 %v264, %v1445
    %v1447 = vpop.f32.mrf.mxu0
    %1448 = vdwg.mxu0
    %1449 = vmatpush.bf16.msra.mxu0 %v920
    %1450 = vmatpush.bf16.msra.mxu0 %v916
    %1451 = vmatpush.bf16.msra.mxu0 %v912
    %1452 = vmatpush.bf16.msra.mxu0 %v908
    %1453 = vmatpush.bf16.msra.mxu0 %v904
    %1454 = vmatpush.bf16.msra.mxu0 %v900
    %1455 = vmatpush.bf16.msra.mxu0 %v896
    %1456 = vmatpush.bf16.msra.mxu0 %v892
    %1457 = vmatmul.bf16.gmra.mxu0 %v58
    %v1458 = vpop.f32.mrf.mxu0
    %v1459 = vadd.f32 %v1446, %v1458
    %v1460 = vpop.f32.mrf.mxu0
    %1461 = vdwg.mxu0
    %1462 = vmatpush.bf16.msra.mxu0 %v952
    %1463 = vmatpush.bf16.msra.mxu0 %v948
    %1464 = vmatpush.bf16.msra.mxu0 %v944
    %1465 = vmatpush.bf16.msra.mxu0 %v940
    %1466 = vmatpush.bf16.msra.mxu0 %v936
    %1467 = vmatpush.bf16.msra.mxu0 %v932
    %1468 = vmatpush.bf16.msra.mxu0 %v928
    %1469 = vmatpush.bf16.msra.mxu0 %v924
    %1470 = vmatmul.bf16.gmra.mxu0 %v59
    %v1471 = vpop.f32.mrf.mxu0
    %v1472 = vadd.f32 %v1459, %v1471
    %v1473 = vpop.f32.mrf.mxu0
    %1474 = vdwg.mxu0
    %1475 = vmatpush.bf16.msra.mxu0 %v984
    %1476 = vmatpush.bf16.msra.mxu0 %v980
    %1477 = vmatpush.bf16.msra.mxu0 %v976
    %1478 = vmatpush.bf16.msra.mxu0 %v972
    %1479 = vmatpush.bf16.msra.mxu0 %v968
    %1480 = vmatpush.bf16.msra.mxu0 %v964
    %1481 = vmatpush.bf16.msra.mxu0 %v960
    %1482 = vmatpush.bf16.msra.mxu0 %v956
    %1483 = vmatmul.bf16.gmra.mxu0 %v60
    %v1484 = vpop.f32.mrf.mxu0
    %v1485 = vadd.f32 %v1472, %v1484
    %v1486 = vpop.f32.mrf.mxu0
    %1487 = vdwg.mxu0
    %1488 = vmatpush.bf16.msra.mxu0 %v1016
    %1489 = vmatpush.bf16.msra.mxu0 %v1012
    %1490 = vmatpush.bf16.msra.mxu0 %v1008
    %1491 = vmatpush.bf16.msra.mxu0 %v1004
    %1492 = vmatpush.bf16.msra.mxu0 %v1000
    %1493 = vmatpush.bf16.msra.mxu0 %v996
    %1494 = vmatpush.bf16.msra.mxu0 %v992
    %1495 = vmatpush.bf16.msra.mxu0 %v988
    %1496 = vmatmul.bf16.gmra.mxu0 %v61
    %v1497 = vpop.f32.mrf.mxu0
    %v1498 = vadd.f32 %v1485, %v1497
    %v1499 = vpop.f32.mrf.mxu0
    %1500 = vdwg.mxu0
    %1501 = vmatpush.bf16.msra.mxu0 %v1048
    %1502 = vmatpush.bf16.msra.mxu0 %v1044
    %1503 = vmatpush.bf16.msra.mxu0 %v1040
    %1504 = vmatpush.bf16.msra.mxu0 %v1036
    %1505 = vmatpush.bf16.msra.mxu0 %v1032
    %1506 = vmatpush.bf16.msra.mxu0 %v1028
    %1507 = vmatpush.bf16.msra.mxu0 %v1024
    %1508 = vmatpush.bf16.msra.mxu0 %v1020
    %1509 = vmatmul.bf16.gmra.mxu0 %v62
    %v1510 = vpop.f32.mrf.mxu0
    %v1511 = vadd.f32 %v1498, %v1510
    %v1512 = vpop.f32.mrf.mxu0
    %1513 = vdwg.mxu0
    %1514 = vmatpush.bf16.msra.mxu0 0
    %1515 = vmatpush.bf16.msra.mxu0 0
    %1516 = vmatpush.bf16.msra.mxu0 0
    %1517 = vmatpush.bf16.msra.mxu0 0
    %1518 = vmatpush.bf16.msra.mxu0 0
    %1519 = vmatpush.bf16.msra.mxu0 0
    %1520 = vmatpush.bf16.msra.mxu0 0
    %1521 = vmatpush.bf16.msra.mxu0 %v1052
    %1522 = vmatmul.bf16.gmra.mxu0 %v1252
    %v1523 = vpop.f32.mrf.mxu0
    %v1524 = vadd.f32 %v1511, %v1523
    %v1525 = vpop.f32.mrf.mxu0
    %1526 = vdwg.mxu0
    %1527 = vmatpush.bf16.msra.mxu0 %v889
    %1528 = vmatpush.bf16.msra.mxu0 %v885
    %1529 = vmatpush.bf16.msra.mxu0 %v881
    %1530 = vmatpush.bf16.msra.mxu0 %v877
    %1531 = vmatpush.bf16.msra.mxu0 %v873
    %1532 = vmatpush.bf16.msra.mxu0 %v869
    %1533 = vmatpush.bf16.msra.mxu0 %v865
    %1534 = vmatpush.bf16.msra.mxu0 %v861
    %1535 = vmatmul.bf16.gmra.mxu0 %v57
    %v1536 = vpop.f32.mrf.mxu0
    %v1537 = vadd.f32 %v265, %v1536
    %v1538 = vpop.f32.mrf.mxu0
    %1539 = vdwg.mxu0
    %1540 = vmatpush.bf16.msra.mxu0 %v921
    %1541 = vmatpush.bf16.msra.mxu0 %v917
    %1542 = vmatpush.bf16.msra.mxu0 %v913
    %1543 = vmatpush.bf16.msra.mxu0 %v909
    %1544 = vmatpush.bf16.msra.mxu0 %v905
    %1545 = vmatpush.bf16.msra.mxu0 %v901
    %1546 = vmatpush.bf16.msra.mxu0 %v897
    %1547 = vmatpush.bf16.msra.mxu0 %v893
    %1548 = vmatmul.bf16.gmra.mxu0 %v58
    %v1549 = vpop.f32.mrf.mxu0
    %v1550 = vadd.f32 %v1537, %v1549
    %v1551 = vpop.f32.mrf.mxu0
    %1552 = vdwg.mxu0
    %1553 = vmatpush.bf16.msra.mxu0 %v953
    %1554 = vmatpush.bf16.msra.mxu0 %v949
    %1555 = vmatpush.bf16.msra.mxu0 %v945
    %1556 = vmatpush.bf16.msra.mxu0 %v941
    %1557 = vmatpush.bf16.msra.mxu0 %v937
    %1558 = vmatpush.bf16.msra.mxu0 %v933
    %1559 = vmatpush.bf16.msra.mxu0 %v929
    %1560 = vmatpush.bf16.msra.mxu0 %v925
    %1561 = vmatmul.bf16.gmra.mxu0 %v59
    %v1562 = vpop.f32.mrf.mxu0
    %v1563 = vadd.f32 %v1550, %v1562
    %v1564 = vpop.f32.mrf.mxu0
    %1565 = vdwg.mxu0
    %1566 = vmatpush.bf16.msra.mxu0 %v985
    %1567 = vmatpush.bf16.msra.mxu0 %v981
    %1568 = vmatpush.bf16.msra.mxu0 %v977
    %1569 = vmatpush.bf16.msra.mxu0 %v973
    %1570 = vmatpush.bf16.msra.mxu0 %v969
    %1571 = vmatpush.bf16.msra.mxu0 %v965
    %1572 = vmatpush.bf16.msra.mxu0 %v961
    %1573 = vmatpush.bf16.msra.mxu0 %v957
    %1574 = vmatmul.bf16.gmra.mxu0 %v60
    %v1575 = vpop.f32.mrf.mxu0
    %v1576 = vadd.f32 %v1563, %v1575
    %v1577 = vpop.f32.mrf.mxu0
    %1578 = vdwg.mxu0
    %1579 = vmatpush.bf16.msra.mxu0 %v1017
    %1580 = vmatpush.bf16.msra.mxu0 %v1013
    %1581 = vmatpush.bf16.msra.mxu0 %v1009
    %1582 = vmatpush.bf16.msra.mxu0 %v1005
    %1583 = vmatpush.bf16.msra.mxu0 %v1001
    %1584 = vmatpush.bf16.msra.mxu0 %v997
    %1585 = vmatpush.bf16.msra.mxu0 %v993
    %1586 = vmatpush.bf16.msra.mxu0 %v989
    %1587 = vmatmul.bf16.gmra.mxu0 %v61
    %v1588 = vpop.f32.mrf.mxu0
    %v1589 = vadd.f32 %v1576, %v1588
    %v1590 = vpop.f32.mrf.mxu0
    %1591 = vdwg.mxu0
    %1592 = vmatpush.bf16.msra.mxu0 %v1049
    %1593 = vmatpush.bf16.msra.mxu0 %v1045
    %1594 = vmatpush.bf16.msra.mxu0 %v1041
    %1595 = vmatpush.bf16.msra.mxu0 %v1037
    %1596 = vmatpush.bf16.msra.mxu0 %v1033
    %1597 = vmatpush.bf16.msra.mxu0 %v1029
    %1598 = vmatpush.bf16.msra.mxu0 %v1025
    %1599 = vmatpush.bf16.msra.mxu0 %v1021
    %1600 = vmatmul.bf16.gmra.mxu0 %v62
    %v1601 = vpop.f32.mrf.mxu0
    %v1602 = vadd.f32 %v1589, %v1601
    %v1603 = vpop.f32.mrf.mxu0
    %1604 = vdwg.mxu0
    %1605 = vmatpush.bf16.msra.mxu0 0
    %1606 = vmatpush.bf16.msra.mxu0 0
    %1607 = vmatpush.bf16.msra.mxu0 0
    %1608 = vmatpush.bf16.msra.mxu0 0
    %1609 = vmatpush.bf16.msra.mxu0 0
    %1610 = vmatpush.bf16.msra.mxu0 0
    %1611 = vmatpush.bf16.msra.mxu0 0
    %1612 = vmatpush.bf16.msra.mxu0 %v1053
    %1613 = vmatmul.bf16.gmra.mxu0 %v1252
    %v1614 = vpop.f32.mrf.mxu0
    %v1615 = vadd.f32 %v1602, %v1614
    %v1616 = vpop.f32.mrf.mxu0
    %1617 = vdwg.mxu0
    %v1618 = vmax.f32 %v1342, 0.0
    %v1619 = vmax.f32 %v1433, 0.0
    %v1620 = vmax.f32 %v1524, 0.0
    %v1621 = vmax.f32 %v1615, 0.0
    %v1622 = vpack.c.bf16 %v1618, %v1618
    %v1623 = vpack.c.bf16 %v1619, %v1619
    %v1624 = vpack.c.bf16 %v1620, %v1620
    %v1625 = vpack.c.bf16 %v1621, %v1621
    %v1626 = vld [vmem:[%s3] sm:$0xff]
    %v1627 = vld [vmem:[%s3 + $0x8] sm:$0xff]
    %v1628 = vld [vmem:[%s3 + $0x10] sm:$0xff]
    %v1629 = vld [vmem:[%s3 + $0x18] sm:$0xff]
    %v1630 = vld [vmem:[%s3 + $0x20] sm:$0xff]
    %v1631 = vld [vmem:[%s3 + $0x28] sm:$0xff]
    %v1632 = vld [vmem:[%s3 + $0x30] sm:$0xff]
    %v1633 = vld [vmem:[%s3 + $0x38] sm:$0xff]
    %v1634 = vld [vmem:[%s3 + $0x40] sm:$0xff]
    %v1635 = vld [vmem:[%s3 + $0x48] sm:$0xff]
    %v1636 = vld [vmem:[%s3 + $0x50] sm:$0xff]
    %v1637 = vld [vmem:[%s3 + $0x58] sm:$0xff]
    %v1638 = vld [vmem:[%s3 + $0x60] sm:$0xff]
    %v1639 = vld [vmem:[%s3 + $0x68] sm:$0xff]
    %v1640 = vld [vmem:[%s3 + $0x70] sm:$0xff]
    %v1641 = vld [vmem:[%s3 + $0x78] sm:$0xff]
    %v1642 = vld [vmem:[%s3 + $0x80] sm:$0xff]
    %v1643 = vld [vmem:[%s3 + $0x88] sm:$0xff]
    %v1644 = vld [vmem:[%s3 + $0x90] sm:$0xff]
    %v1645 = vld [vmem:[%s3 + $0x98] sm:$0xff]
    %v1646 = vld [vmem:[%s3 + $0xa0] sm:$0xff]
    %v1647 = vld [vmem:[%s3 + $0xa8] sm:$0xff]
    %v1648 = vld [vmem:[%s3 + $0xb0] sm:$0xff]
    %v1649 = vld [vmem:[%s3 + $0xb8] sm:$0xff]
    %v1650 = vld [vmem:[%s3 + $0xc0] sm:$0xff]
    %v1651 = vld [vmem:[%s3 + $0xc8] sm:$0xff]
    %v1652 = vld [vmem:[%s3 + $0xd0] sm:$0xff]
    %v1653 = vld [vmem:[%s3 + $0xd8] sm:$0xff]
    %v1654 = vld [vmem:[%s3 + $0xe0] sm:$0xff]
    %v1655 = vld [vmem:[%s3 + $0xe8] sm:$0xff]
    %v1656 = vld [vmem:[%s3 + $0xf0] sm:$0xff]
    %v1657 = vld [vmem:[%s3 + $0xf8] sm:$0xff]
    %v1658 = vld [vmem:[%s3 + $0x100] sm:$0xff]
    %v1659 = vld [vmem:[%s3 + $0x108] sm:$0xff]
    %v1660 = vld [vmem:[%s3 + $0x110] sm:$0xff]
    %v1661 = vld [vmem:[%s3 + $0x118] sm:$0xff]
    %v1662 = vld [vmem:[%s3 + $0x120] sm:$0xff]
    %v1663 = vld [vmem:[%s3 + $0x128] sm:$0xff]
    %v1664 = vld [vmem:[%s3 + $0x130] sm:$0xff]
    %v1665 = vld [vmem:[%s3 + $0x138] sm:$0xff]
    %v1666 = vld [vmem:[%s3 + $0x140] sm:$0xff]
    %v1667 = vld [vmem:[%s3 + $0x148] sm:$0xff]
    %v1668 = vld [vmem:[%s3 + $0x150] sm:$0xff]
    %v1669 = vld [vmem:[%s3 + $0x158] sm:$0xff]
    %v1670 = vld [vmem:[%s3 + $0x160] sm:$0xff]
    %v1671 = vld [vmem:[%s3 + $0x168] sm:$0xff]
    %v1672 = vld [vmem:[%s3 + $0x170] sm:$0xff]
    %v1673 = vld [vmem:[%s3 + $0x178] sm:$0xff]
    %v1674 = vld [vmem:[%s3 + $0x180] sm:$0xff]
    %v1675 = vld [vmem:[%s3 + $0x188] sm:$0xff]
    %v1676 = vld [vmem:[%s3 + $0x190] sm:$0xff]
    %v1677 = vld [vmem:[%s3 + $0x198] sm:$0xff]
    %v1678 = vld [vmem:[%s3 + $0x1a0] sm:$0xff]
    %v1679 = vld [vmem:[%s3 + $0x1a8] sm:$0xff]
    %v1680 = vld [vmem:[%s3 + $0x1b0] sm:$0xff]
    %v1681 = vld [vmem:[%s3 + $0x1b8] sm:$0xff]
    %v1682 = vld [vmem:[%s3 + $0x1c0] sm:$0xff]
    %v1683 = vld [vmem:[%s3 + $0x1c8] sm:$0xff]
    %v1684 = vld [vmem:[%s3 + $0x1d0] sm:$0xff]
    %v1685 = vld [vmem:[%s3 + $0x1d8] sm:$0xff]
    %v1686 = vld [vmem:[%s3 + $0x1e0] sm:$0xff]
    %v1687 = vld [vmem:[%s3 + $0x1e8] sm:$0xff]
    %v1688 = vld [vmem:[%s3 + $0x1f0] sm:$0xff]
    %v1689 = vld [vmem:[%s3 + $0x1f8] sm:$0xff]
    %v1690 = vld [vmem:[%s4] sm:$0x3]
    %v1692 = vperm.slane %v1690, 0
    %v1693 = vperm.slane %v1690, 1
    %v1760 = vunpack.c.l.b16 %v1626
    %v1761 = vunpack.c.h.b16 %v1626
    %v1762 = vunpack.c.l.b16 %v1627
    %v1763 = vunpack.c.h.b16 %v1627
    %v1764 = vunpack.c.l.b16 %v1628
    %v1765 = vunpack.c.h.b16 %v1628
    %v1766 = vunpack.c.l.b16 %v1629
    %v1767 = vunpack.c.h.b16 %v1629
    %v1768 = vunpack.c.l.b16 %v1630
    %v1769 = vunpack.c.h.b16 %v1630
    %v1770 = vunpack.c.l.b16 %v1631
    %v1771 = vunpack.c.h.b16 %v1631
    %v1772 = vunpack.c.l.b16 %v1632
    %v1773 = vunpack.c.h.b16 %v1632
    %v1774 = vunpack.c.l.b16 %v1633
    %v1775 = vunpack.c.h.b16 %v1633
    %v1776 = vunpack.c.l.b16 %v1634
    %v1777 = vunpack.c.h.b16 %v1634
    %v1778 = vunpack.c.l.b16 %v1635
    %v1779 = vunpack.c.h.b16 %v1635
    %v1780 = vunpack.c.l.b16 %v1636
    %v1781 = vunpack.c.h.b16 %v1636
    %v1782 = vunpack.c.l.b16 %v1637
    %v1783 = vunpack.c.h.b16 %v1637
    %v1784 = vunpack.c.l.b16 %v1638
    %v1785 = vunpack.c.h.b16 %v1638
    %v1786 = vunpack.c.l.b16 %v1639
    %v1787 = vunpack.c.h.b16 %v1639
    %v1788 = vunpack.c.l.b16 %v1640
    %v1789 = vunpack.c.h.b16 %v1640
    %v1790 = vunpack.c.l.b16 %v1641
    %v1791 = vunpack.c.h.b16 %v1641
    %v1792 = vunpack.c.l.b16 %v1642
    %v1793 = vunpack.c.h.b16 %v1642
    %v1794 = vunpack.c.l.b16 %v1643
    %v1795 = vunpack.c.h.b16 %v1643
    %v1796 = vunpack.c.l.b16 %v1644
    %v1797 = vunpack.c.h.b16 %v1644
    %v1798 = vunpack.c.l.b16 %v1645
    %v1799 = vunpack.c.h.b16 %v1645
    %v1800 = vunpack.c.l.b16 %v1646
    %v1801 = vunpack.c.h.b16 %v1646
    %v1802 = vunpack.c.l.b16 %v1647
    %v1803 = vunpack.c.h.b16 %v1647
    %v1804 = vunpack.c.l.b16 %v1648
    %v1805 = vunpack.c.h.b16 %v1648
    %v1806 = vunpack.c.l.b16 %v1649
    %v1807 = vunpack.c.h.b16 %v1649
    %v1808 = vunpack.c.l.b16 %v1650
    %v1809 = vunpack.c.h.b16 %v1650
    %v1810 = vunpack.c.l.b16 %v1651
    %v1811 = vunpack.c.h.b16 %v1651
    %v1812 = vunpack.c.l.b16 %v1652
    %v1813 = vunpack.c.h.b16 %v1652
    %v1814 = vunpack.c.l.b16 %v1653
    %v1815 = vunpack.c.h.b16 %v1653
    %v1816 = vunpack.c.l.b16 %v1654
    %v1817 = vunpack.c.h.b16 %v1654
    %v1818 = vunpack.c.l.b16 %v1655
    %v1819 = vunpack.c.h.b16 %v1655
    %v1820 = vunpack.c.l.b16 %v1656
    %v1821 = vunpack.c.h.b16 %v1656
    %v1822 = vunpack.c.l.b16 %v1657
    %v1823 = vunpack.c.h.b16 %v1657
    %v1824 = vunpack.c.l.b16 %v1658
    %v1825 = vunpack.c.h.b16 %v1658
    %v1826 = vunpack.c.l.b16 %v1659
    %v1827 = vunpack.c.h.b16 %v1659
    %v1828 = vunpack.c.l.b16 %v1660
    %v1829 = vunpack.c.h.b16 %v1660
    %v1830 = vunpack.c.l.b16 %v1661
    %v1831 = vunpack.c.h.b16 %v1661
    %v1832 = vunpack.c.l.b16 %v1662
    %v1833 = vunpack.c.h.b16 %v1662
    %v1834 = vunpack.c.l.b16 %v1663
    %v1835 = vunpack.c.h.b16 %v1663
    %v1836 = vunpack.c.l.b16 %v1664
    %v1837 = vunpack.c.h.b16 %v1664
    %v1838 = vunpack.c.l.b16 %v1665
    %v1839 = vunpack.c.h.b16 %v1665
    %v1840 = vunpack.c.l.b16 %v1666
    %v1841 = vunpack.c.h.b16 %v1666
    %v1842 = vunpack.c.l.b16 %v1667
    %v1843 = vunpack.c.h.b16 %v1667
    %v1844 = vunpack.c.l.b16 %v1668
    %v1845 = vunpack.c.h.b16 %v1668
    %v1846 = vunpack.c.l.b16 %v1669
    %v1847 = vunpack.c.h.b16 %v1669
    %v1848 = vunpack.c.l.b16 %v1670
    %v1849 = vunpack.c.h.b16 %v1670
    %v1850 = vunpack.c.l.b16 %v1671
    %v1851 = vunpack.c.h.b16 %v1671
    %v1852 = vunpack.c.l.b16 %v1672
    %v1853 = vunpack.c.h.b16 %v1672
    %v1854 = vunpack.c.l.b16 %v1673
    %v1855 = vunpack.c.h.b16 %v1673
    %v1856 = vunpack.c.l.b16 %v1674
    %v1857 = vunpack.c.h.b16 %v1674
    %v1858 = vunpack.c.l.b16 %v1675
    %v1859 = vunpack.c.h.b16 %v1675
    %v1860 = vunpack.c.l.b16 %v1676
    %v1861 = vunpack.c.h.b16 %v1676
    %v1862 = vunpack.c.l.b16 %v1677
    %v1863 = vunpack.c.h.b16 %v1677
    %v1864 = vunpack.c.l.b16 %v1678
    %v1865 = vunpack.c.h.b16 %v1678
    %v1866 = vunpack.c.l.b16 %v1679
    %v1867 = vunpack.c.h.b16 %v1679
    %v1868 = vunpack.c.l.b16 %v1680
    %v1869 = vunpack.c.h.b16 %v1680
    %v1870 = vunpack.c.l.b16 %v1681
    %v1871 = vunpack.c.h.b16 %v1681
    %v1872 = vunpack.c.l.b16 %v1682
    %v1873 = vunpack.c.h.b16 %v1682
    %v1874 = vunpack.c.l.b16 %v1683
    %v1875 = vunpack.c.h.b16 %v1683
    %v1876 = vunpack.c.l.b16 %v1684
    %v1877 = vunpack.c.h.b16 %v1684
    %v1878 = vunpack.c.l.b16 %v1685
    %v1879 = vunpack.c.h.b16 %v1685
    %v1880 = vunpack.c.l.b16 %v1686
    %v1881 = vunpack.c.h.b16 %v1686
    %v1882 = vunpack.c.l.b16 %v1687
    %v1883 = vunpack.c.h.b16 %v1687
    %v1884 = vunpack.c.l.b16 %v1688
    %v1885 = vunpack.c.h.b16 %v1688
    %v1886 = vunpack.c.l.b16 %v1689
    %v1887 = vunpack.c.h.b16 %v1689
    %v1888 = vpack.c.b16 %v1762, %v1760
    %v1889 = vpack.c.b16 %v1763, %v1761
    %v1890 = vpack.c.b16 %v1766, %v1764
    %v1891 = vpack.c.b16 %v1767, %v1765
    %v1892 = vpack.c.b16 %v1770, %v1768
    %v1893 = vpack.c.b16 %v1771, %v1769
    %v1894 = vpack.c.b16 %v1774, %v1772
    %v1895 = vpack.c.b16 %v1775, %v1773
    %v1896 = vpack.c.b16 %v1778, %v1776
    %v1897 = vpack.c.b16 %v1779, %v1777
    %v1898 = vpack.c.b16 %v1782, %v1780
    %v1899 = vpack.c.b16 %v1783, %v1781
    %v1900 = vpack.c.b16 %v1786, %v1784
    %v1901 = vpack.c.b16 %v1787, %v1785
    %v1902 = vpack.c.b16 %v1790, %v1788
    %v1903 = vpack.c.b16 %v1791, %v1789
    %v1904 = vpack.c.b16 %v1794, %v1792
    %v1905 = vpack.c.b16 %v1795, %v1793
    %v1906 = vpack.c.b16 %v1798, %v1796
    %v1907 = vpack.c.b16 %v1799, %v1797
    %v1908 = vpack.c.b16 %v1802, %v1800
    %v1909 = vpack.c.b16 %v1803, %v1801
    %v1910 = vpack.c.b16 %v1806, %v1804
    %v1911 = vpack.c.b16 %v1807, %v1805
    %v1912 = vpack.c.b16 %v1810, %v1808
    %v1913 = vpack.c.b16 %v1811, %v1809
    %v1914 = vpack.c.b16 %v1814, %v1812
    %v1915 = vpack.c.b16 %v1815, %v1813
    %v1916 = vpack.c.b16 %v1818, %v1816
    %v1917 = vpack.c.b16 %v1819, %v1817
    %v1918 = vpack.c.b16 %v1822, %v1820
    %v1919 = vpack.c.b16 %v1823, %v1821
    %v1920 = vpack.c.b16 %v1826, %v1824
    %v1921 = vpack.c.b16 %v1827, %v1825
    %v1922 = vpack.c.b16 %v1830, %v1828
    %v1923 = vpack.c.b16 %v1831, %v1829
    %v1924 = vpack.c.b16 %v1834, %v1832
    %v1925 = vpack.c.b16 %v1835, %v1833
    %v1926 = vpack.c.b16 %v1838, %v1836
    %v1927 = vpack.c.b16 %v1839, %v1837
    %v1928 = vpack.c.b16 %v1842, %v1840
    %v1929 = vpack.c.b16 %v1843, %v1841
    %v1930 = vpack.c.b16 %v1846, %v1844
    %v1931 = vpack.c.b16 %v1847, %v1845
    %v1932 = vpack.c.b16 %v1850, %v1848
    %v1933 = vpack.c.b16 %v1851, %v1849
    %v1934 = vpack.c.b16 %v1854, %v1852
    %v1935 = vpack.c.b16 %v1855, %v1853
    %v1936 = vpack.c.b16 %v1858, %v1856
    %v1937 = vpack.c.b16 %v1859, %v1857
    %v1938 = vpack.c.b16 %v1862, %v1860
    %v1939 = vpack.c.b16 %v1863, %v1861
    %v1940 = vpack.c.b16 %v1866, %v1864
    %v1941 = vpack.c.b16 %v1867, %v1865
    %v1942 = vpack.c.b16 %v1870, %v1868
    %v1943 = vpack.c.b16 %v1871, %v1869
    %v1944 = vpack.c.b16 %v1874, %v1872
    %v1945 = vpack.c.b16 %v1875, %v1873
    %v1946 = vpack.c.b16 %v1878, %v1876
    %v1947 = vpack.c.b16 %v1879, %v1877
    %v1948 = vpack.c.b16 %v1882, %v1880
    %v1949 = vpack.c.b16 %v1883, %v1881
    %v1950 = vpack.c.b16 %v1886, %v1884
    %v1951 = vpack.c.b16 %v1887, %v1885
    %2016 = vmatpush.bf16.msra.mxu0 %v1902
    %2017 = vmatpush.bf16.msra.mxu0 %v1900
    %2018 = vmatpush.bf16.msra.mxu0 %v1898
    %2019 = vmatpush.bf16.msra.mxu0 %v1896
    %2020 = vmatpush.bf16.msra.mxu0 %v1894
    %2021 = vmatpush.bf16.msra.mxu0 %v1892
    %2022 = vmatpush.bf16.msra.mxu0 %v1890
    %2023 = vmatpush.bf16.msra.mxu0 %v1888
    %2024 = vmatmul.bf16.gmra.mxu0 %v1622
    %v2025 = vpop.f32.mrf.mxu0
    %v2026 = vadd.f32 %v1692, %v2025
    %v2027 = vpop.f32.mrf.mxu0
    %2028 = vdwg.mxu0
    %2029 = vmatpush.bf16.msra.mxu0 %v1918
    %2030 = vmatpush.bf16.msra.mxu0 %v1916
    %2031 = vmatpush.bf16.msra.mxu0 %v1914
    %2032 = vmatpush.bf16.msra.mxu0 %v1912
    %2033 = vmatpush.bf16.msra.mxu0 %v1910
    %2034 = vmatpush.bf16.msra.mxu0 %v1908
    %2035 = vmatpush.bf16.msra.mxu0 %v1906
    %2036 = vmatpush.bf16.msra.mxu0 %v1904
    %2037 = vmatmul.bf16.gmra.mxu0 %v1623
    %v2038 = vpop.f32.mrf.mxu0
    %v2039 = vadd.f32 %v2026, %v2038
    %v2040 = vpop.f32.mrf.mxu0
    %2041 = vdwg.mxu0
    %2042 = vmatpush.bf16.msra.mxu0 %v1934
    %2043 = vmatpush.bf16.msra.mxu0 %v1932
    %2044 = vmatpush.bf16.msra.mxu0 %v1930
    %2045 = vmatpush.bf16.msra.mxu0 %v1928
    %2046 = vmatpush.bf16.msra.mxu0 %v1926
    %2047 = vmatpush.bf16.msra.mxu0 %v1924
    %2048 = vmatpush.bf16.msra.mxu0 %v1922
    %2049 = vmatpush.bf16.msra.mxu0 %v1920
    %2050 = vmatmul.bf16.gmra.mxu0 %v1624
    %v2051 = vpop.f32.mrf.mxu0
    %v2052 = vadd.f32 %v2039, %v2051
    %v2053 = vpop.f32.mrf.mxu0
    %2054 = vdwg.mxu0
    %2055 = vmatpush.bf16.msra.mxu0 %v1950
    %2056 = vmatpush.bf16.msra.mxu0 %v1948
    %2057 = vmatpush.bf16.msra.mxu0 %v1946
    %2058 = vmatpush.bf16.msra.mxu0 %v1944
    %2059 = vmatpush.bf16.msra.mxu0 %v1942
    %2060 = vmatpush.bf16.msra.mxu0 %v1940
    %2061 = vmatpush.bf16.msra.mxu0 %v1938
    %2062 = vmatpush.bf16.msra.mxu0 %v1936
    %2063 = vmatmul.bf16.gmra.mxu0 %v1625
    %v2064 = vpop.f32.mrf.mxu0
    %v2065 = vadd.f32 %v2052, %v2064
    %v2066 = vpop.f32.mrf.mxu0
    %2067 = vdwg.mxu0
    %2068 = vmatpush.bf16.msra.mxu0 %v1903
    %2069 = vmatpush.bf16.msra.mxu0 %v1901
    %2070 = vmatpush.bf16.msra.mxu0 %v1899
    %2071 = vmatpush.bf16.msra.mxu0 %v1897
    %2072 = vmatpush.bf16.msra.mxu0 %v1895
    %2073 = vmatpush.bf16.msra.mxu0 %v1893
    %2074 = vmatpush.bf16.msra.mxu0 %v1891
    %2075 = vmatpush.bf16.msra.mxu0 %v1889
    %2076 = vmatmul.bf16.gmra.mxu0 %v1622
    %v2077 = vpop.f32.mrf.mxu0
    %v2078 = vadd.f32 %v1693, %v2077
    %v2079 = vpop.f32.mrf.mxu0
    %2080 = vdwg.mxu0
    %2081 = vmatpush.bf16.msra.mxu0 %v1919
    %2082 = vmatpush.bf16.msra.mxu0 %v1917
    %2083 = vmatpush.bf16.msra.mxu0 %v1915
    %2084 = vmatpush.bf16.msra.mxu0 %v1913
    %2085 = vmatpush.bf16.msra.mxu0 %v1911
    %2086 = vmatpush.bf16.msra.mxu0 %v1909
    %2087 = vmatpush.bf16.msra.mxu0 %v1907
    %2088 = vmatpush.bf16.msra.mxu0 %v1905
    %2089 = vmatmul.bf16.gmra.mxu0 %v1623
    %v2090 = vpop.f32.mrf.mxu0
    %v2091 = vadd.f32 %v2078, %v2090
    %v2092 = vpop.f32.mrf.mxu0
    %2093 = vdwg.mxu0
    %2094 = vmatpush.bf16.msra.mxu0 %v1935
    %2095 = vmatpush.bf16.msra.mxu0 %v1933
    %2096 = vmatpush.bf16.msra.mxu0 %v1931
    %2097 = vmatpush.bf16.msra.mxu0 %v1929
    %2098 = vmatpush.bf16.msra.mxu0 %v1927
    %2099 = vmatpush.bf16.msra.mxu0 %v1925
    %2100 = vmatpush.bf16.msra.mxu0 %v1923
    %2101 = vmatpush.bf16.msra.mxu0 %v1921
    %2102 = vmatmul.bf16.gmra.mxu0 %v1624
    %v2103 = vpop.f32.mrf.mxu0
    %v2104 = vadd.f32 %v2091, %v2103
    %v2105 = vpop.f32.mrf.mxu0
    %2106 = vdwg.mxu0
    %2107 = vmatpush.bf16.msra.mxu0 %v1951
    %2108 = vmatpush.bf16.msra.mxu0 %v1949
    %2109 = vmatpush.bf16.msra.mxu0 %v1947
    %2110 = vmatpush.bf16.msra.mxu0 %v1945
    %2111 = vmatpush.bf16.msra.mxu0 %v1943
    %2112 = vmatpush.bf16.msra.mxu0 %v1941
    %2113 = vmatpush.bf16.msra.mxu0 %v1939
    %2114 = vmatpush.bf16.msra.mxu0 %v1937
    %2115 = vmatmul.bf16.gmra.mxu0 %v1625
    %v2116 = vpop.f32.mrf.mxu0
    %v2117 = vadd.f32 %v2104, %v2116
    %v2118 = vpop.f32.mrf.mxu0
    %2119 = vdwg.mxu0
    %v2120 = vmax.f32 %v2065, 0.0
    %v2121 = vmax.f32 %v2117, 0.0
    %v2122 = vpack.c.bf16 %v2120, %v2120
    %v2123 = vpack.c.bf16 %v2121, %v2121
    %v2124 = vld [vmem:[%s5] sm:$0xf]
    %v2125 = vld [vmem:[%s5 + $0x4] sm:$0xf]
    %v2126 = vld [vmem:[%s5 + $0x8] sm:$0xf]
    %v2127 = vld [vmem:[%s5 + $0xc] sm:$0xf]
    %v2128 = vld [vmem:[%s5 + $0x10] sm:$0xf]
    %v2129 = vld [vmem:[%s5 + $0x14] sm:$0xf]
    %v2130 = vld [vmem:[%s5 + $0x18] sm:$0xf]
    %v2131 = vld [vmem:[%s5 + $0x1c] sm:$0xf]
    %v2132 = vld [vmem:[%s5 + $0x20] sm:$0xf]
    %v2133 = vld [vmem:[%s5 + $0x24] sm:$0xf]
    %v2134 = vld [vmem:[%s5 + $0x28] sm:$0xf]
    %v2135 = vld [vmem:[%s5 + $0x2c] sm:$0xf]
    %v2136 = vld [vmem:[%s5 + $0x30] sm:$0xf]
    %v2137 = vld [vmem:[%s5 + $0x34] sm:$0xf]
    %v2138 = vld [vmem:[%s5 + $0x38] sm:$0xf]
    %v2139 = vld [vmem:[%s5 + $0x3c] sm:$0xf]
    %v2140 = vld [vmem:[%s5 + $0x40] sm:$0xf]
    %v2141 = vld [vmem:[%s5 + $0x44] sm:$0xf]
    %v2142 = vld [vmem:[%s5 + $0x48] sm:$0xf]
    %v2143 = vld [vmem:[%s5 + $0x4c] sm:$0xf]
    %v2144 = vld [vmem:[%s5 + $0x50] sm:$0xf]
    %v2145 = vld [vmem:[%s5 + $0x54] sm:$0xf]
    %v2146 = vld [vmem:[%s5 + $0x58] sm:$0xf]
    %v2147 = vld [vmem:[%s5 + $0x5c] sm:$0xf]
    %v2148 = vld [vmem:[%s5 + $0x60] sm:$0xf]
    %v2149 = vld [vmem:[%s5 + $0x64] sm:$0xf]
    %v2150 = vld [vmem:[%s5 + $0x68] sm:$0xf]
    %v2151 = vld [vmem:[%s5 + $0x6c] sm:$0xf]
    %v2152 = vld [vmem:[%s5 + $0x70] sm:$0xf]
    %v2153 = vld [vmem:[%s5 + $0x74] sm:$0xf]
    %v2154 = vld [vmem:[%s5 + $0x78] sm:$0xf]
    %v2155 = vld [vmem:[%s5 + $0x7c] sm:$0xf]
    %v2156 = vld [vmem:[%s6] sm:$0x1]
    %v2158 = vperm.slane %v2156, 0
    %v2192 = vunpack.c.l.b16 %v2124
    %v2193 = vunpack.c.l.b16 %v2125
    %v2194 = vunpack.c.l.b16 %v2126
    %v2195 = vunpack.c.l.b16 %v2127
    %v2196 = vunpack.c.l.b16 %v2128
    %v2197 = vunpack.c.l.b16 %v2129
    %v2198 = vunpack.c.l.b16 %v2130
    %v2199 = vunpack.c.l.b16 %v2131
    %v2200 = vunpack.c.l.b16 %v2132
    %v2201 = vunpack.c.l.b16 %v2133
    %v2202 = vunpack.c.l.b16 %v2134
    %v2203 = vunpack.c.l.b16 %v2135
    %v2204 = vunpack.c.l.b16 %v2136
    %v2205 = vunpack.c.l.b16 %v2137
    %v2206 = vunpack.c.l.b16 %v2138
    %v2207 = vunpack.c.l.b16 %v2139
    %v2208 = vunpack.c.l.b16 %v2140
    %v2209 = vunpack.c.l.b16 %v2141
    %v2210 = vunpack.c.l.b16 %v2142
    %v2211 = vunpack.c.l.b16 %v2143
    %v2212 = vunpack.c.l.b16 %v2144
    %v2213 = vunpack.c.l.b16 %v2145
    %v2214 = vunpack.c.l.b16 %v2146
    %v2215 = vunpack.c.l.b16 %v2147
    %v2216 = vunpack.c.l.b16 %v2148
    %v2217 = vunpack.c.l.b16 %v2149
    %v2218 = vunpack.c.l.b16 %v2150
    %v2219 = vunpack.c.l.b16 %v2151
    %v2220 = vunpack.c.l.b16 %v2152
    %v2221 = vunpack.c.l.b16 %v2153
    %v2222 = vunpack.c.l.b16 %v2154
    %v2223 = vunpack.c.l.b16 %v2155
    %v2224 = vpack.c.b16 %v2193, %v2192
    %v2225 = vpack.c.b16 %v2195, %v2194
    %v2226 = vpack.c.b16 %v2197, %v2196
    %v2227 = vpack.c.b16 %v2199, %v2198
    %v2228 = vpack.c.b16 %v2201, %v2200
    %v2229 = vpack.c.b16 %v2203, %v2202
    %v2230 = vpack.c.b16 %v2205, %v2204
    %v2231 = vpack.c.b16 %v2207, %v2206
    %v2232 = vpack.c.b16 %v2209, %v2208
    %v2233 = vpack.c.b16 %v2211, %v2210
    %v2234 = vpack.c.b16 %v2213, %v2212
    %v2235 = vpack.c.b16 %v2215, %v2214
    %v2236 = vpack.c.b16 %v2217, %v2216
    %v2237 = vpack.c.b16 %v2219, %v2218
    %v2238 = vpack.c.b16 %v2221, %v2220
    %v2239 = vpack.c.b16 %v2223, %v2222
    %2256 = vmatpush.bf16.msra.mxu0 %v2231
    %2257 = vmatpush.bf16.msra.mxu0 %v2230
    %2258 = vmatpush.bf16.msra.mxu0 %v2229
    %2259 = vmatpush.bf16.msra.mxu0 %v2228
    %2260 = vmatpush.bf16.msra.mxu0 %v2227
    %2261 = vmatpush.bf16.msra.mxu0 %v2226
    %2262 = vmatpush.bf16.msra.mxu0 %v2225
    %2263 = vmatpush.bf16.msra.mxu0 %v2224
    %2264 = vmatmul.bf16.gmra.mxu0 %v2122
    %v2265 = vpop.f32.mrf.mxu0
    %v2266 = vadd.f32 %v2158, %v2265
    %v2267 = vpop.f32.mrf.mxu0
    %2268 = vdwg.mxu0
    %2269 = vmatpush.bf16.msra.mxu0 %v2239
    %2270 = vmatpush.bf16.msra.mxu0 %v2238
    %2271 = vmatpush.bf16.msra.mxu0 %v2237
    %2272 = vmatpush.bf16.msra.mxu0 %v2236
    %2273 = vmatpush.bf16.msra.mxu0 %v2235
    %2274 = vmatpush.bf16.msra.mxu0 %v2234
    %2275 = vmatpush.bf16.msra.mxu0 %v2233
    %2276 = vmatpush.bf16.msra.mxu0 %v2232
    %2277 = vmatmul.bf16.gmra.mxu0 %v2123
    %v2278 = vpop.f32.mrf.mxu0
    %v2279 = vadd.f32 %v2266, %v2278
    %v2280 = vpop.f32.mrf.mxu0
    %2281 = vdwg.mxu0
    %v2282 = vmax.f32 %v2279, 0.0
    %v2283 = vpack.c.bf16 %v2282, %v2282
    %v2284 = vld [vmem:[%s7] sm:$0xf]
    %v2285 = vld [vmem:[%s7 + $0x4] sm:$0xf]
    %v2286 = vld [vmem:[%s7 + $0x8] sm:$0xf]
    %v2287 = vld [vmem:[%s7 + $0xc] sm:$0xf]
    %v2288 = vld [vmem:[%s7 + $0x10] sm:$0xf]
    %v2289 = vld [vmem:[%s7 + $0x14] sm:$0xf]
    %v2290 = vld [vmem:[%s7 + $0x18] sm:$0xf]
    %v2291 = vld [vmem:[%s7 + $0x1c] sm:$0xf]
    %v2292 = vld [vmem:[%s7 + $0x20] sm:$0xf]
    %v2293 = vld [vmem:[%s7 + $0x24] sm:$0xf]
    %v2294 = vld [vmem:[%s7 + $0x28] sm:$0xf]
    %v2295 = vld [vmem:[%s7 + $0x2c] sm:$0xf]
    %v2296 = vld [vmem:[%s7 + $0x30] sm:$0xf]
    %v2297 = vld [vmem:[%s7 + $0x34] sm:$0xf]
    %v2298 = vld [vmem:[%s7 + $0x38] sm:$0xf]
    %v2299 = vld [vmem:[%s7 + $0x3c] sm:$0xf]
    %v2300 = vld [vmem:[%s8] sm:$0x1]
    %v2302 = vperm.slane %v2300, 0
    %v2320 = vunpack.c.l.b16 %v2284
    %v2321 = vunpack.c.l.b16 %v2285
    %v2322 = vunpack.c.l.b16 %v2286
    %v2323 = vunpack.c.l.b16 %v2287
    %v2324 = vunpack.c.l.b16 %v2288
    %v2325 = vunpack.c.l.b16 %v2289
    %v2326 = vunpack.c.l.b16 %v2290
    %v2327 = vunpack.c.l.b16 %v2291
    %v2328 = vunpack.c.l.b16 %v2292
    %v2329 = vunpack.c.l.b16 %v2293
    %v2330 = vunpack.c.l.b16 %v2294
    %v2331 = vunpack.c.l.b16 %v2295
    %v2332 = vunpack.c.l.b16 %v2296
    %v2333 = vunpack.c.l.b16 %v2297
    %v2334 = vunpack.c.l.b16 %v2298
    %v2335 = vunpack.c.l.b16 %v2299
    %v2336 = vpack.c.b16 %v2321, %v2320
    %v2337 = vpack.c.b16 %v2323, %v2322
    %v2338 = vpack.c.b16 %v2325, %v2324
    %v2339 = vpack.c.b16 %v2327, %v2326
    %v2340 = vpack.c.b16 %v2329, %v2328
    %v2341 = vpack.c.b16 %v2331, %v2330
    %v2342 = vpack.c.b16 %v2333, %v2332
    %v2343 = vpack.c.b16 %v2335, %v2334
    %2352 = vmatpush.bf16.msra.mxu0 %v2343
    %2353 = vmatpush.bf16.msra.mxu0 %v2342
    %2354 = vmatpush.bf16.msra.mxu0 %v2341
    %2355 = vmatpush.bf16.msra.mxu0 %v2340
    %2356 = vmatpush.bf16.msra.mxu0 %v2339
    %2357 = vmatpush.bf16.msra.mxu0 %v2338
    %2358 = vmatpush.bf16.msra.mxu0 %v2337
    %2359 = vmatpush.bf16.msra.mxu0 %v2336
    %2360 = vmatmul.bf16.gmra.mxu0 %v2283
    %v2361 = vpop.f32.mrf.mxu0
    %v2362 = vadd.f32 %v2302, %v2361
    %v2363 = vpop.f32.mrf.mxu0
    %2364 = vdwg.mxu0
    %2365 = vst [vmem:[#allocation5] sm:$0xff] %v2362
    // Predicated region
    $region42: #{fc_mnist_forward.1} parent=1 // pred_check
      _
    $region43: #{fc_mnist_forward.1} parent=1 // pred_check_branch
      %2367 = sbr.rel (0) target = $region45
    $region44: #{fc_mnist_forward.1} parent=1 // pred_region
      %2369 = vsyncadd [#allocation4], 0
      %s2371 = sshll.u32 [#allocation5], 4
      %s2372 = int_to_ptr.vmem [resolvable:$true] %s2371
      %s2373 = sshll.u32 %s9, 4
      %s2374 = int_to_ptr.hbm [resolvable:$true] %s2373
      %2376 = dma.vmem_to_hbm [thread:$0]  %s2372, 128, %s2374, [#allocation4]
    $region45: #{fc_mnist_forward.1} parent=1 // pred_fallthru
      _
    // Predicated region
    $region46: #{fc_mnist_forward.1} parent=1 // pred_check
      _
    $region47: #{fc_mnist_forward.1} parent=1 // pred_check_branch
      %2378 = sbr.rel (0) target = $region49
    $region48: #{fc_mnist_forward.1} parent=1 // pred_region
      %2380 = dma.done [#allocation4], 128
    $region49: #{fc_mnist_forward.1} parent=1 // pred_fallthru
      _
    %2381 = vsyncpa [#allocation3], 1
    %2382 = vsyncpa [#allocation4], 1

</llo_original>
